<compile_context>
chip_gen: v6e
topology: v6e:2x2x1
jax: 0.10.0
libtpu: 0.0.40
codegen_flags: <defaults>
</compile_context>

<pallas_src>
import math

import jax
import jax.numpy as jnp
from jax.experimental import pallas as pl
from jax.experimental.pallas import tpu as pltpu  # noqa: F401  (TPU backend)

# ----------------------------- model hyperparams ----------------------------
B = 2          # batch
S = 8          # seq len
H = 32         # hidden size
NUM_HEADS = 4
HEAD_DIM = H // NUM_HEADS
FFN_DIM = 4 * H
EPS = 1e-5     # nn.LayerNorm default
BN = B * NUM_HEADS


def _layer_norm(x, gamma, beta):
    mu = jnp.mean(x, axis=-1, keepdims=True)
    var = jnp.mean((x - mu) ** 2, axis=-1, keepdims=True)
    return (x - mu) * jax.lax.rsqrt(var + EPS) * gamma + beta


def decoder_layer_kernel(
    x_ref,            # (B, S, H)
    bias_ref,         # (S, S) additive attention-mask bias
    wqkv_ref,         # (B*NH, H, 3*HEAD_DIM)  (1/sqrt(HEAD_DIM) folded into the Q part)
    bqkv_ref,         # (B*NH, 1, 3*HEAD_DIM)
    wo_ref,           # (B*NH, HEAD_DIM, H)
    bo_ref,           # (1, H)
    g1_ref, be1_ref,  # (1, H)
    w1_ref, b1_ref,   # (H, FFN_DIM), (1, FFN_DIM)
    w2_ref, b2_ref,   # (FFN_DIM, H), (1, H)
    g2_ref, be2_ref,  # (1, H)
    out_ref,          # (B, S, H)
):
    x = x_ref[...].astype(jnp.float32)                                    # (B, S, H)

    # Replicate activations over heads: xb[b*NH + n] = x[b] (leading-dim only, no relayout).
    xb = jnp.broadcast_to(x[:, None], (B, NUM_HEADS, S, H)).reshape(BN, S, H)

    # Fused, head-batched Q/K/V projection: (BN,S,H) @ (BN,H,3*HD) -> (BN,S,3*HD)
    qkv = jnp.einsum('bsh,bhe->bse', xb, wqkv_ref[...],
                     preferred_element_type=jnp.float32) + bqkv_ref[...]
    q = qkv[:, :, :HEAD_DIM]
    k = qkv[:, :, HEAD_DIM:2 * HEAD_DIM]
    v = qkv[:, :, 2 * HEAD_DIM:]

    # Scaled dot-product attention for all (batch, head) pairs at once.
    scores = jnp.einsum('bqd,bkd->bqk', q, k,
                        preferred_element_type=jnp.float32) + bias_ref[...]   # (BN,S,S)
    m = jnp.max(scores, axis=-1, keepdims=True)
    e = jnp.exp(scores - m)
    probs = e * pl.reciprocal(jnp.sum(e, axis=-1, keepdims=True), approx=True)
    # TODO(synk): dropout (attention probs + residual branches) omitted — identity in eval mode.
    ctx = jnp.einsum('bqk,bkd->bqd', probs, v,
                     preferred_element_type=jnp.float32)                      # (BN,S,HD)

    # Per-head output projection, then sum over heads (== concat(heads) @ Wo).
    o_h = jnp.einsum('bsd,bdh->bsh', ctx, wo_ref[...],
                     preferred_element_type=jnp.float32)                      # (BN,S,H)
    o_h = o_h.reshape(B, NUM_HEADS, S, H)
    attn = o_h[:, 0]
    for n in range(1, NUM_HEADS):
        attn = attn + o_h[:, n]
    attn = attn + bo_ref[...]                                                 # (B,S,H)

    # ---- residual + LayerNorm 1 ----
    x1 = _layer_norm(x + attn, g1_ref[...], be1_ref[...])                     # (B,S,H)

    # ---- position-wise FFN on the flattened (B*S, H) view (S == sublane tile -> free reshape) ----
    x1f = x1.reshape(B * S, H)
    h1 = jnp.dot(x1f, w1_ref[...], preferred_element_type=jnp.float32) + b1_ref[...]
    h1 = jnp.maximum(h1, 0.0)                                                 # ReLU
    ffn = jnp.dot(h1, w2_ref[...], preferred_element_type=jnp.float32) + b2_ref[...]

    # ---- residual + LayerNorm 2 ----
    x2 = _layer_norm(x1f + ffn, g2_ref[...], be2_ref[...])                    # (B*S, H)

    out_ref[...] = x2.reshape(B, S, H).astype(out_ref.dtype)


@jax.jit
def transformer_decoder_layer(x, attn_mask, params):
    (wq, bq, wk, bk, wv, bv, wo, bo,
     g1, be1, w1, b1, w2, b2, g2, be2) = params

    inv_scale = jnp.float32(1.0 / math.sqrt(HEAD_DIM))

    def heads_of(w):   # (H, H) -> (NUM_HEADS, H, HEAD_DIM); head n = output cols [n*HD, (n+1)*HD)
        return w.reshape(H, NUM_HEADS, HEAD_DIM).transpose(1, 0, 2)

    def head_bias(b_):  # (1, H) -> (NUM_HEADS, 1, HEAD_DIM)
        return b_.reshape(NUM_HEADS, 1, HEAD_DIM)

    # Packed per-(batch, head) weights/biases; attention scale folded into Q.
    w_qkv = jnp.concatenate([heads_of(wq * inv_scale), heads_of(wk), heads_of(wv)], axis=-1)
    w_qkv = jnp.broadcast_to(w_qkv[None], (B,) + w_qkv.shape).reshape(BN, H, 3 * HEAD_DIM)

    b_qkv = jnp.concatenate([head_bias(bq * inv_scale), head_bias(bk), head_bias(bv)], axis=-1)
    b_qkv = jnp.broadcast_to(b_qkv[None], (B,) + b_qkv.shape).reshape(BN, 1, 3 * HEAD_DIM)

    wo_h = wo.reshape(NUM_HEADS, HEAD_DIM, H)          # head n = input rows [n*HD, (n+1)*HD)
    wo_h = jnp.broadcast_to(wo_h[None], (B,) + wo_h.shape).reshape(BN, HEAD_DIM, H)

    # Additive mask bias (NaN-safe, one add for all heads in the kernel).
    mask_bias = jnp.where(attn_mask == 0, jnp.float32(-1e9), jnp.float32(0.0))

    kernel_args = (x, mask_bias, w_qkv, b_qkv, wo_h, bo,
                   g1, be1, w1, b1, w2, b2, g2, be2)

    flops = (2 * B * S * H * 3 * H                 # fused QKV projection
             + 2 * BN * S * S * HEAD_DIM * 2       # scores + probs @ V
             + 2 * B * S * H * H                   # output projection
             + 2 * B * S * H * FFN_DIM * 2)        # FFN
    transcendentals = BN * S * S + 4 * B * S       # exp + rsqrt/reciprocal
    bytes_accessed = sum(int(a.size) * 4 for a in kernel_args) + B * S * H * 4

    # No grid: one kernel invocation, full arrays resident in VMEM (default whole-array blocks).
    return pl.pallas_call(
        decoder_layer_kernel,
        out_shape=jax.ShapeDtypeStruct((B, S, H), x.dtype),
        cost_estimate=pl.CostEstimate(flops=int(flops),
                                      transcendentals=int(transcendentals),
                                      bytes_accessed=int(bytes_accessed)),
    )(*kernel_args)


# ------------------------- pure-JAX reference (check) ------------------------
def reference_forward(x, attn_mask, params):
    (wq, bq, wk, bk, wv, bv, wo, bo,
     g1, be1, w1, b1, w2, b2, g2, be2) = params

    def ln(z, g, b):
        mu = jnp.mean(z, axis=-1, keepdims=True)
        var = jnp.mean((z - mu) ** 2, axis=-1, keepdims=True)
        return (z - mu) * jax.lax.rsqrt(var + EPS) * g + b

    q = x @ wq + bq
    k = x @ wk + bk
    v = x @ wv + bv

    def split(t):
        return t.reshape(B, S, NUM_HEADS, HEAD_DIM).transpose(0, 2, 1, 3)

    qh, kh, vh = split(q), split(k), split(v)
    scores = jnp.einsum('bnqd,bnkd->bnqk', qh, kh) / math.sqrt(HEAD_DIM)
    scores = jnp.where(attn_mask[None, None] == 0.0, -jnp.inf, scores)
    probs = jax.nn.softmax(scores, axis=-1)
    ctx = jnp.einsum('bnqk,bnkd->bnqd', probs, vh)
    ctx = ctx.transpose(0, 2, 1, 3).reshape(B, S, H)
    attn_out = ctx @ wo + bo
    x1 = ln(x + attn_out, g1, be1)
    hdn = jax.nn.relu(x1 @ w1 + b1)
    ffn_out = hdn @ w2 + b2
    return ln(x1 + ffn_out, g2, be2)


if __name__ == "__main__":
    key = jax.random.PRNGKey(0)
    keys = jax.random.split(key, 12)

    def init_w(k, shape, fan_in):
        bound = 1.0 / math.sqrt(fan_in)
        return jax.random.uniform(k, shape, jnp.float32, -bound, bound)

    wq = init_w(keys[0], (H, H), H);   bq = init_w(keys[1], (1, H), H)
    wk = init_w(keys[2], (H, H), H);   bk = init_w(keys[3], (1, H), H)
    wv = init_w(keys[4], (H, H), H);   bv = init_w(keys[5], (1, H), H)
    wo = init_w(keys[6], (H, H), H);   bo = init_w(keys[7], (1, H), H)
    g1 = jnp.ones((1, H), jnp.float32);  be1 = jnp.zeros((1, H), jnp.float32)
    w1 = init_w(keys[8], (H, FFN_DIM), H);        b1 = init_w(keys[9], (1, FFN_DIM), H)
    w2 = init_w(keys[10], (FFN_DIM, H), FFN_DIM); b2 = init_w(keys[11], (1, H), FFN_DIM)
    g2 = jnp.ones((1, H), jnp.float32);  be2 = jnp.zeros((1, H), jnp.float32)

    params = (wq, bq, wk, bk, wv, bv, wo, bo,
              g1, be1, w1, b1, w2, b2, g2, be2)

    xk, _ = jax.random.split(jax.random.PRNGKey(42))
    x = jax.random.normal(xk, (B, S, H), jnp.float32)
    # causal mask: 1 where key <= query, 0 elsewhere
    attn_mask = jnp.tril(jnp.ones((S, S), jnp.float32))

    out = transformer_decoder_layer(x, attn_mask, params)
    out = jax.block_until_ready(out)

    ref = reference_forward(x, attn_mask, params)
    assert out.shape == (B, S, H)
    # Tolerance accounts for the approximate (EUP) reciprocal in the softmax normalization.
    assert jnp.allclose(out, ref, atol=1e-2, rtol=1e-2), "mismatch vs reference"

    print("KERNEL_OK")
</pallas_src>

<mosaic_0001>
module attributes {stable_mosaic.version = 11 : i64} {
  func.func @decoder_layer_kernel(%arg0: memref<2x8x32xf32, #tpu.memory_space<vmem>>, %arg1: memref<8x8xf32, #tpu.memory_space<vmem>>, %arg2: memref<8x32x24xf32, #tpu.memory_space<vmem>>, %arg3: memref<8x1x24xf32, #tpu.memory_space<vmem>>, %arg4: memref<8x8x32xf32, #tpu.memory_space<vmem>>, %arg5: memref<1x32xf32, #tpu.memory_space<vmem>>, %arg6: memref<1x32xf32, #tpu.memory_space<vmem>>, %arg7: memref<1x32xf32, #tpu.memory_space<vmem>>, %arg8: memref<32x128xf32, #tpu.memory_space<vmem>>, %arg9: memref<1x128xf32, #tpu.memory_space<vmem>>, %arg10: memref<128x32xf32, #tpu.memory_space<vmem>>, %arg11: memref<1x32xf32, #tpu.memory_space<vmem>>, %arg12: memref<1x32xf32, #tpu.memory_space<vmem>>, %arg13: memref<1x32xf32, #tpu.memory_space<vmem>>, %arg14: memref<2x8x32xf32, #tpu.memory_space<vmem>>) attributes {dimension_semantics = [], scalar_prefetch = 0 : i64, scratch_operands = 0 : i64, tpu.core_type = #tpu.core_type<tc>} {
    %c0 = arith.constant 0 : index
    %c0_0 = arith.constant 0 : index
    %c0_1 = arith.constant 0 : index
    %0 = vector.load %arg0[%c0, %c0_0, %c0_1] : memref<2x8x32xf32, #tpu.memory_space<vmem>>, vector<2x8x32xf32>
    %1 = vector.shape_cast %0 : vector<2x8x32xf32> to vector<2x1x8x32xf32>
    %2 = vector.shape_cast %1 : vector<2x1x8x32xf32> to vector<2x1x8x32xf32>
    %3 = vector.broadcast %2 : vector<2x1x8x32xf32> to vector<2x4x8x32xf32>
    %4 = vector.shape_cast %3 : vector<2x4x8x32xf32> to vector<8x8x32xf32>
    %c0_2 = arith.constant 0 : index
    %c0_3 = arith.constant 0 : index
    %c0_4 = arith.constant 0 : index
    %5 = vector.load %arg2[%c0_2, %c0_3, %c0_4] : memref<8x32x24xf32, #tpu.memory_space<vmem>>, vector<8x32x24xf32>
    "tpu.trace_start"() <{level = 10 : i32, message = "bsh,bhe->bse"}> : () -> ()
    %cst = arith.constant dense<0.000000e+00> : vector<8x8x24xf32>
    %6 = tpu.matmul %4, %5, %cst {dimension_numbers = #tpu.dot_dimension_numbers<[2], [1], [1], [2], [0, 0, 0, 1, 1, 2], [0], [0]>} : vector<8x8x32xf32>, vector<8x32x24xf32>, vector<8x8x24xf32> -> vector<8x8x24xf32>
    "tpu.trace_stop"() : () -> ()
    %c0_5 = arith.constant 0 : index
    %c0_6 = arith.constant 0 : index
    %c0_7 = arith.constant 0 : index
    %7 = vector.load %arg3[%c0_5, %c0_6, %c0_7] : memref<8x1x24xf32, #tpu.memory_space<vmem>>, vector<8x1x24xf32>
    %8 = vector.broadcast %7 : vector<8x1x24xf32> to vector<8x8x24xf32>
    %9 = arith.addf %6, %8 : vector<8x8x24xf32>
    %10 = vector.extract_strided_slice %9 {offsets = [0, 0, 0], sizes = [8, 8, 8], strides = [1, 1, 1]} : vector<8x8x24xf32> to vector<8x8x8xf32>
    %11 = vector.extract_strided_slice %9 {offsets = [0, 0, 8], sizes = [8, 8, 8], strides = [1, 1, 1]} : vector<8x8x24xf32> to vector<8x8x8xf32>
    %12 = vector.extract_strided_slice %9 {offsets = [0, 0, 16], sizes = [8, 8, 8], strides = [1, 1, 1]} : vector<8x8x24xf32> to vector<8x8x8xf32>
    "tpu.trace_start"() <{level = 10 : i32, message = "bqd,bkd->bqk"}> : () -> ()
    %cst_8 = arith.constant dense<0.000000e+00> : vector<8x8x8xf32>
    %13 = tpu.matmul %10, %11, %cst_8 {dimension_numbers = #tpu.dot_dimension_numbers<[2], [2], [1], [1], [0, 0, 0, 1, 1, 1], [0], [0]>} : vector<8x8x8xf32>, vector<8x8x8xf32>, vector<8x8x8xf32> -> vector<8x8x8xf32>
    "tpu.trace_stop"() : () -> ()
    %c0_9 = arith.constant 0 : index
    %c0_10 = arith.constant 0 : index
    %14 = vector.load %arg1[%c0_9, %c0_10] : memref<8x8xf32, #tpu.memory_space<vmem>>, vector<8x8xf32>
    %15 = vector.shape_cast %14 : vector<8x8xf32> to vector<1x8x8xf32>
    %16 = vector.broadcast %15 : vector<1x8x8xf32> to vector<8x8x8xf32>
    %17 = arith.addf %13, %16 : vector<8x8x8xf32>
    %cst_11 = arith.constant dense<0xFF800000> : vector<8x8xf32>
    %18 = vector.multi_reduction <maximumf>, %17, %cst_11 [2] : vector<8x8x8xf32> to vector<8x8xf32>
    %19 = vector.shape_cast %18 : vector<8x8xf32> to vector<8x8x1xf32>
    %20 = vector.broadcast %19 : vector<8x8x1xf32> to vector<8x8x8xf32>
    %21 = arith.subf %17, %20 : vector<8x8x8xf32>
    %22 = math.exp %21 : vector<8x8x8xf32>
    %cst_12 = arith.constant dense<0.000000e+00> : vector<8x8xf32>
    %23 = vector.multi_reduction <add>, %22, %cst_12 [2] : vector<8x8x8xf32> to vector<8x8xf32>
    %24 = vector.shape_cast %23 : vector<8x8xf32> to vector<8x8x1xf32>
    %25 = tpu.reciprocal %24 {approx = true} : vector<8x8x1xf32> -> vector<8x8x1xf32>
    %26 = vector.broadcast %25 : vector<8x8x1xf32> to vector<8x8x8xf32>
    %27 = arith.mulf %22, %26 : vector<8x8x8xf32>
    "tpu.trace_start"() <{level = 10 : i32, message = "bqk,bkd->bqd"}> : () -> ()
    %cst_13 = arith.constant dense<0.000000e+00> : vector<8x8x8xf32>
    %28 = tpu.matmul %27, %12, %cst_13 {dimension_numbers = #tpu.dot_dimension_numbers<[2], [1], [1], [2], [0, 0, 0, 1, 1, 2], [0], [0]>} : vector<8x8x8xf32>, vector<8x8x8xf32>, vector<8x8x8xf32> -> vector<8x8x8xf32>
    "tpu.trace_stop"() : () -> ()
    %c0_14 = arith.constant 0 : index
    %c0_15 = arith.constant 0 : index
    %c0_16 = arith.constant 0 : index
    %29 = vector.load %arg4[%c0_14, %c0_15, %c0_16] : memref<8x8x32xf32, #tpu.memory_space<vmem>>, vector<8x8x32xf32>
    "tpu.trace_start"() <{level = 10 : i32, message = "bsd,bdh->bsh"}> : () -> ()
    %cst_17 = arith.constant dense<0.000000e+00> : vector<8x8x32xf32>
    %30 = tpu.matmul %28, %29, %cst_17 {dimension_numbers = #tpu.dot_dimension_numbers<[2], [1], [1], [2], [0, 0, 0, 1, 1, 2], [0], [0]>} : vector<8x8x8xf32>, vector<8x8x32xf32>, vector<8x8x32xf32> -> vector<8x8x32xf32>
    "tpu.trace_stop"() : () -> ()
    %31 = vector.shape_cast %30 : vector<8x8x32xf32> to vector<2x4x8x32xf32>
    %32 = vector.extract_strided_slice %31 {offsets = [0, 0, 0, 0], sizes = [2, 1, 8, 32], strides = [1, 1, 1, 1]} : vector<2x4x8x32xf32> to vector<2x1x8x32xf32>
    %33 = vector.shape_cast %32 : vector<2x1x8x32xf32> to vector<2x8x32xf32>
    %34 = vector.extract_strided_slice %31 {offsets = [0, 1, 0, 0], sizes = [2, 1, 8, 32], strides = [1, 1, 1, 1]} : vector<2x4x8x32xf32> to vector<2x1x8x32xf32>
    %35 = vector.shape_cast %34 : vector<2x1x8x32xf32> to vector<2x8x32xf32>
    %36 = arith.addf %33, %35 : vector<2x8x32xf32>
    %37 = vector.extract_strided_slice %31 {offsets = [0, 2, 0, 0], sizes = [2, 1, 8, 32], strides = [1, 1, 1, 1]} : vector<2x4x8x32xf32> to vector<2x1x8x32xf32>
    %38 = vector.shape_cast %37 : vector<2x1x8x32xf32> to vector<2x8x32xf32>
    %39 = arith.addf %36, %38 : vector<2x8x32xf32>
    %40 = vector.extract_strided_slice %31 {offsets = [0, 3, 0, 0], sizes = [2, 1, 8, 32], strides = [1, 1, 1, 1]} : vector<2x4x8x32xf32> to vector<2x1x8x32xf32>
    %41 = vector.shape_cast %40 : vector<2x1x8x32xf32> to vector<2x8x32xf32>
    %42 = arith.addf %39, %41 : vector<2x8x32xf32>
    %c0_18 = arith.constant 0 : index
    %c0_19 = arith.constant 0 : index
    %43 = vector.load %arg5[%c0_18, %c0_19] : memref<1x32xf32, #tpu.memory_space<vmem>>, vector<1x32xf32>
    %44 = vector.shape_cast %43 : vector<1x32xf32> to vector<1x1x32xf32>
    %45 = vector.broadcast %44 : vector<1x1x32xf32> to vector<2x8x32xf32>
    %46 = arith.addf %42, %45 : vector<2x8x32xf32>
    %47 = arith.addf %0, %46 : vector<2x8x32xf32>
    %c0_20 = arith.constant 0 : index
    %c0_21 = arith.constant 0 : index
    %48 = vector.load %arg6[%c0_20, %c0_21] : memref<1x32xf32, #tpu.memory_space<vmem>>, vector<1x32xf32>
    %c0_22 = arith.constant 0 : index
    %c0_23 = arith.constant 0 : index
    %49 = vector.load %arg7[%c0_22, %c0_23] : memref<1x32xf32, #tpu.memory_space<vmem>>, vector<1x32xf32>
    %cst_24 = arith.constant dense<0.000000e+00> : vector<2x8xf32>
    %50 = vector.multi_reduction <add>, %47, %cst_24 [2] : vector<2x8x32xf32> to vector<2x8xf32>
    %51 = vector.shape_cast %50 : vector<2x8xf32> to vector<2x8x1xf32>
    %cst_25 = arith.constant 3.200000e+01 : f32
    %52 = vector.broadcast %cst_25 : f32 to vector<2x8x1xf32>
    %53 = arith.divf %51, %52 : vector<2x8x1xf32>
    %54 = vector.broadcast %53 : vector<2x8x1xf32> to vector<2x8x32xf32>
    %55 = arith.subf %47, %54 : vector<2x8x32xf32>
    %56 = arith.mulf %55, %55 : vector<2x8x32xf32>
    %cst_26 = arith.constant dense<0.000000e+00> : vector<2x8xf32>
    %57 = vector.multi_reduction <add>, %56, %cst_26 [2] : vector<2x8x32xf32> to vector<2x8xf32>
    %58 = vector.shape_cast %57 : vector<2x8xf32> to vector<2x8x1xf32>
    %cst_27 = arith.constant 3.200000e+01 : f32
    %59 = vector.broadcast %cst_27 : f32 to vector<2x8x1xf32>
    %60 = arith.divf %58, %59 : vector<2x8x1xf32>
    %61 = vector.broadcast %53 : vector<2x8x1xf32> to vector<2x8x32xf32>
    %62 = arith.subf %47, %61 : vector<2x8x32xf32>
    %cst_28 = arith.constant 9.99999974E-6 : f32
    %63 = vector.broadcast %cst_28 : f32 to vector<2x8x1xf32>
    %64 = arith.addf %60, %63 : vector<2x8x1xf32>
    %65 = math.rsqrt %64 : vector<2x8x1xf32>
    %66 = vector.broadcast %65 : vector<2x8x1xf32> to vector<2x8x32xf32>
    %67 = arith.mulf %62, %66 : vector<2x8x32xf32>
    %68 = vector.shape_cast %48 : vector<1x32xf32> to vector<1x1x32xf32>
    %69 = vector.broadcast %68 : vector<1x1x32xf32> to vector<2x8x32xf32>
    %70 = arith.mulf %67, %69 : vector<2x8x32xf32>
    %71 = vector.shape_cast %49 : vector<1x32xf32> to vector<1x1x32xf32>
    %72 = vector.broadcast %71 : vector<1x1x32xf32> to vector<2x8x32xf32>
    %73 = arith.addf %70, %72 : vector<2x8x32xf32>
    %74 = vector.shape_cast %73 : vector<2x8x32xf32> to vector<16x32xf32>
    %c0_29 = arith.constant 0 : index
    %c0_30 = arith.constant 0 : index
    %75 = vector.load %arg8[%c0_29, %c0_30] : memref<32x128xf32, #tpu.memory_space<vmem>>, vector<32x128xf32>
    %cst_31 = arith.constant dense<0.000000e+00> : vector<16x128xf32>
    %76 = tpu.matmul %74, %75, %cst_31 {dimension_numbers = #tpu.dot_dimension_numbers<[1], [0], [0], [1], [0, 0, 1, 1], [], []>} : vector<16x32xf32>, vector<32x128xf32>, vector<16x128xf32> -> vector<16x128xf32>
    %c0_32 = arith.constant 0 : index
    %c0_33 = arith.constant 0 : index
    %77 = vector.load %arg9[%c0_32, %c0_33] : memref<1x128xf32, #tpu.memory_space<vmem>>, vector<1x128xf32>
    %78 = vector.broadcast %77 : vector<1x128xf32> to vector<16x128xf32>
    %79 = arith.addf %76, %78 : vector<16x128xf32>
    %cst_34 = arith.constant 0.000000e+00 : f32
    %80 = vector.broadcast %cst_34 : f32 to vector<16x128xf32>
    %81 = arith.maximumf %79, %80 : vector<16x128xf32>
    %c0_35 = arith.constant 0 : index
    %c0_36 = arith.constant 0 : index
    %82 = vector.load %arg10[%c0_35, %c0_36] : memref<128x32xf32, #tpu.memory_space<vmem>>, vector<128x32xf32>
    %cst_37 = arith.constant dense<0.000000e+00> : vector<16x32xf32>
    %83 = tpu.matmul %81, %82, %cst_37 {dimension_numbers = #tpu.dot_dimension_numbers<[1], [0], [0], [1], [0, 0, 1, 1], [], []>} : vector<16x128xf32>, vector<128x32xf32>, vector<16x32xf32> -> vector<16x32xf32>
    %c0_38 = arith.constant 0 : index
    %c0_39 = arith.constant 0 : index
    %84 = vector.load %arg11[%c0_38, %c0_39] : memref<1x32xf32, #tpu.memory_space<vmem>>, vector<1x32xf32>
    %85 = vector.broadcast %84 : vector<1x32xf32> to vector<16x32xf32>
    %86 = arith.addf %83, %85 : vector<16x32xf32>
    %87 = arith.addf %74, %86 : vector<16x32xf32>
    %c0_40 = arith.constant 0 : index
    %c0_41 = arith.constant 0 : index
    %88 = vector.load %arg12[%c0_40, %c0_41] : memref<1x32xf32, #tpu.memory_space<vmem>>, vector<1x32xf32>
    %c0_42 = arith.constant 0 : index
    %c0_43 = arith.constant 0 : index
    %89 = vector.load %arg13[%c0_42, %c0_43] : memref<1x32xf32, #tpu.memory_space<vmem>>, vector<1x32xf32>
    %cst_44 = arith.constant dense<0.000000e+00> : vector<16xf32>
    %90 = vector.multi_reduction <add>, %87, %cst_44 [1] : vector<16x32xf32> to vector<16xf32>
    %91 = vector.shape_cast %90 : vector<16xf32> to vector<16x1xf32>
    %cst_45 = arith.constant 3.200000e+01 : f32
    %92 = vector.broadcast %cst_45 : f32 to vector<16x1xf32>
    %93 = arith.divf %91, %92 : vector<16x1xf32>
    %94 = vector.broadcast %93 : vector<16x1xf32> to vector<16x32xf32>
    %95 = arith.subf %87, %94 : vector<16x32xf32>
    %96 = arith.mulf %95, %95 : vector<16x32xf32>
    %cst_46 = arith.constant dense<0.000000e+00> : vector<16xf32>
    %97 = vector.multi_reduction <add>, %96, %cst_46 [1] : vector<16x32xf32> to vector<16xf32>
    %98 = vector.shape_cast %97 : vector<16xf32> to vector<16x1xf32>
    %cst_47 = arith.constant 3.200000e+01 : f32
    %99 = vector.broadcast %cst_47 : f32 to vector<16x1xf32>
    %100 = arith.divf %98, %99 : vector<16x1xf32>
    %101 = vector.broadcast %93 : vector<16x1xf32> to vector<16x32xf32>
    %102 = arith.subf %87, %101 : vector<16x32xf32>
    %cst_48 = arith.constant 9.99999974E-6 : f32
    %103 = vector.broadcast %cst_48 : f32 to vector<16x1xf32>
    %104 = arith.addf %100, %103 : vector<16x1xf32>
    %105 = math.rsqrt %104 : vector<16x1xf32>
    %106 = vector.broadcast %105 : vector<16x1xf32> to vector<16x32xf32>
    %107 = arith.mulf %102, %106 : vector<16x32xf32>
    %108 = vector.broadcast %88 : vector<1x32xf32> to vector<16x32xf32>
    %109 = arith.mulf %107, %108 : vector<16x32xf32>
    %110 = vector.broadcast %89 : vector<1x32xf32> to vector<16x32xf32>
    %111 = arith.addf %109, %110 : vector<16x32xf32>
    %112 = vector.shape_cast %111 : vector<16x32xf32> to vector<2x8x32xf32>
    %c0_49 = arith.constant 0 : index
    %c0_50 = arith.constant 0 : index
    %c0_51 = arith.constant 0 : index
    %113 = vector.load %arg14[%c0_49, %c0_50, %c0_51] : memref<2x8x32xf32, #tpu.memory_space<vmem>>, vector<2x8x32xf32>
    tpu.vector_store %arg14[%c0_49, %c0_50, %c0_51], %112 {strides = array<i32>} : memref<2x8x32xf32, #tpu.memory_space<vmem>>, vector<2x8x32xf32>,
    return
  }
}

</mosaic_0001>

<llo_original>
// kernel: transformer_decoder_layer.1
$region0: #{transformer_decoder_layer.1}
  #allocation0 [shape = 'u32[]', space=smem, size = 0x4, offset = 0x4, fixed_abs, tag = 'smem constant byte address 0x4 - core index']
  #allocation1 [shape = 'u32[144,128]{1,0:T(1,128)}', space=vmem, size = 0x12000, scoped, tag = 'internal scratch']
  %s0 = inlined_call_operand.vmem [shape: f32[2,8,32], index: 0, kind: input, shape index: {}]
  %s1 = inlined_call_operand.vmem [shape: f32[8,8], index: 1, kind: input, shape index: {}]
  %s2 = inlined_call_operand.vmem [shape: f32[8,32,24], index: 2, kind: input, shape index: {}]
  %s3 = inlined_call_operand.vmem [shape: f32[8,1,24], index: 3, kind: input, shape index: {}]
  %s4 = inlined_call_operand.vmem [shape: f32[8,8,32], index: 4, kind: input, shape index: {}]
  %s5 = inlined_call_operand.vmem [shape: f32[1,32], index: 5, kind: input, shape index: {}]
  %s6 = inlined_call_operand.vmem [shape: f32[1,32], index: 6, kind: input, shape index: {}]
  %s7 = inlined_call_operand.vmem [shape: f32[1,32], index: 7, kind: input, shape index: {}]
  %s8 = inlined_call_operand.vmem [shape: f32[32,128], index: 8, kind: input, shape index: {}]
  %s9 = inlined_call_operand.vmem [shape: f32[1,128], index: 9, kind: input, shape index: {}]
  %s10 = inlined_call_operand.vmem [shape: f32[128,32], index: 10, kind: input, shape index: {}]
  %s11 = inlined_call_operand.vmem [shape: f32[1,32], index: 11, kind: input, shape index: {}]
  %s12 = inlined_call_operand.vmem [shape: f32[1,32], index: 12, kind: input, shape index: {}]
  %s13 = inlined_call_operand.vmem [shape: f32[1,32], index: 13, kind: input, shape index: {}]
  %s14 = inlined_call_operand.hbm [shape: f32[2,8,32], index: 14, kind: output, shape index: {}]
  %s15 = sld [smem:[#allocation0]]
  $region66: #{transformer_decoder_layer.1} parent=0
    _
  %s17 = ssub.s32 1, %s15
  %s18 = scalar_select 0, %s17, %s15
  $region1: #{transformer_decoder_layer.1} parent=0
    #allocation2 [shape = 'u8[8192]{0}', space=vmem, size = 0x2000, scoped, tag = 'output window, operand 0, single buffered']
    #allocation3 [shape = 's32[1]{0}', space=sflag, size = 0x4, scoped, tag = 'scoped memory for transformer_decoder_layer.1']
    %19 = vsyncpa [#allocation3], 0
    // Predicated region
    $region2: #{transformer_decoder_layer.1} parent=1 // pred_check
      _
    $region3: #{transformer_decoder_layer.1} parent=1 // pred_check_branch
      %21 = sbr.rel (0) target = $region5
    $region4: #{transformer_decoder_layer.1} parent=1 // pred_region
      _
    $region5: #{transformer_decoder_layer.1} parent=1 // pred_fallthru
      _
    // Predicated region
    $region6: #{transformer_decoder_layer.1} parent=1 // pred_check
      _
    $region7: #{transformer_decoder_layer.1} parent=1 // pred_check_branch
      %23 = sbr.rel (0) target = $region9
    $region8: #{transformer_decoder_layer.1} parent=1 // pred_region
      _
    $region9: #{transformer_decoder_layer.1} parent=1 // pred_fallthru
      _
    // Predicated region
    $region10: #{transformer_decoder_layer.1} parent=1 // pred_check
      _
    $region11: #{transformer_decoder_layer.1} parent=1 // pred_check_branch
      %25 = sbr.rel (0) target = $region13
    $region12: #{transformer_decoder_layer.1} parent=1 // pred_region
      _
    $region13: #{transformer_decoder_layer.1} parent=1 // pred_fallthru
      _
    // Predicated region
    $region14: #{transformer_decoder_layer.1} parent=1 // pred_check
      _
    $region15: #{transformer_decoder_layer.1} parent=1 // pred_check_branch
      %27 = sbr.rel (0) target = $region17
    $region16: #{transformer_decoder_layer.1} parent=1 // pred_region
      _
    $region17: #{transformer_decoder_layer.1} parent=1 // pred_fallthru
      _
    // Predicated region
    $region18: #{transformer_decoder_layer.1} parent=1 // pred_check
      _
    $region19: #{transformer_decoder_layer.1} parent=1 // pred_check_branch
      %29 = sbr.rel (0) target = $region21
    $region20: #{transformer_decoder_layer.1} parent=1 // pred_region
      _
    $region21: #{transformer_decoder_layer.1} parent=1 // pred_fallthru
      _
    // Predicated region
    $region22: #{transformer_decoder_layer.1} parent=1 // pred_check
      _
    $region23: #{transformer_decoder_layer.1} parent=1 // pred_check_branch
      %31 = sbr.rel (0) target = $region25
    $region24: #{transformer_decoder_layer.1} parent=1 // pred_region
      _
    $region25: #{transformer_decoder_layer.1} parent=1 // pred_fallthru
      _
    // Predicated region
    $region26: #{transformer_decoder_layer.1} parent=1 // pred_check
      _
    $region27: #{transformer_decoder_layer.1} parent=1 // pred_check_branch
      %33 = sbr.rel (0) target = $region29
    $region28: #{transformer_decoder_layer.1} parent=1 // pred_region
      _
    $region29: #{transformer_decoder_layer.1} parent=1 // pred_fallthru
      _
    // Predicated region
    $region30: #{transformer_decoder_layer.1} parent=1 // pred_check
      _
    $region31: #{transformer_decoder_layer.1} parent=1 // pred_check_branch
      %35 = sbr.rel (0) target = $region33
    $region32: #{transformer_decoder_layer.1} parent=1 // pred_region
      _
    $region33: #{transformer_decoder_layer.1} parent=1 // pred_fallthru
      _
    // Predicated region
    $region34: #{transformer_decoder_layer.1} parent=1 // pred_check
      _
    $region35: #{transformer_decoder_layer.1} parent=1 // pred_check_branch
      %37 = sbr.rel (0) target = $region37
    $region36: #{transformer_decoder_layer.1} parent=1 // pred_region
      _
    $region37: #{transformer_decoder_layer.1} parent=1 // pred_fallthru
      _
    // Predicated region
    $region38: #{transformer_decoder_layer.1} parent=1 // pred_check
      _
    $region39: #{transformer_decoder_layer.1} parent=1 // pred_check_branch
      %39 = sbr.rel (0) target = $region41
    $region40: #{transformer_decoder_layer.1} parent=1 // pred_region
      _
    $region41: #{transformer_decoder_layer.1} parent=1 // pred_fallthru
      _
    // Predicated region
    $region42: #{transformer_decoder_layer.1} parent=1 // pred_check
      _
    $region43: #{transformer_decoder_layer.1} parent=1 // pred_check_branch
      %41 = sbr.rel (0) target = $region45
    $region44: #{transformer_decoder_layer.1} parent=1 // pred_region
      _
    $region45: #{transformer_decoder_layer.1} parent=1 // pred_fallthru
      _
    // Predicated region
    $region46: #{transformer_decoder_layer.1} parent=1 // pred_check
      _
    $region47: #{transformer_decoder_layer.1} parent=1 // pred_check_branch
      %43 = sbr.rel (0) target = $region49
    $region48: #{transformer_decoder_layer.1} parent=1 // pred_region
      _
    $region49: #{transformer_decoder_layer.1} parent=1 // pred_fallthru
      _
    // Predicated region
    $region50: #{transformer_decoder_layer.1} parent=1 // pred_check
      _
    $region51: #{transformer_decoder_layer.1} parent=1 // pred_check_branch
      %45 = sbr.rel (0) target = $region53
    $region52: #{transformer_decoder_layer.1} parent=1 // pred_region
      _
    $region53: #{transformer_decoder_layer.1} parent=1 // pred_fallthru
      _
    // Predicated region
    $region54: #{transformer_decoder_layer.1} parent=1 // pred_check
      _
    $region55: #{transformer_decoder_layer.1} parent=1 // pred_check_branch
      %47 = sbr.rel (0) target = $region57
    $region56: #{transformer_decoder_layer.1} parent=1 // pred_region
      _
    $region57: #{transformer_decoder_layer.1} parent=1 // pred_fallthru
      _
    %v48 = vld [vmem:[%s0] sm:$0xff]
    %v49 = vld [vmem:[%s0 + $0x8] sm:$0xff]
    %v50 = vld [vmem:[%s2] sm:$0xff]
    %v51 = vld [vmem:[%s2 + $0x8] sm:$0xff]
    %v52 = vld [vmem:[%s2 + $0x10] sm:$0xff]
    %v53 = vld [vmem:[%s2 + $0x18] sm:$0xff]
    %v54 = vld [vmem:[%s2 + $0x20] sm:$0xff]
    %v55 = vld [vmem:[%s2 + $0x28] sm:$0xff]
    %v56 = vld [vmem:[%s2 + $0x30] sm:$0xff]
    %v57 = vld [vmem:[%s2 + $0x38] sm:$0xff]
    %v58 = vld [vmem:[%s2 + $0x40] sm:$0xff]
    %v59 = vld [vmem:[%s2 + $0x48] sm:$0xff]
    %v60 = vld [vmem:[%s2 + $0x50] sm:$0xff]
    %v61 = vld [vmem:[%s2 + $0x58] sm:$0xff]
    %v62 = vld [vmem:[%s2 + $0x60] sm:$0xff]
    %v63 = vld [vmem:[%s2 + $0x68] sm:$0xff]
    %v64 = vld [vmem:[%s2 + $0x70] sm:$0xff]
    %v65 = vld [vmem:[%s2 + $0x78] sm:$0xff]
    %v66 = vld [vmem:[%s2 + $0x80] sm:$0xff]
    %v67 = vld [vmem:[%s2 + $0x88] sm:$0xff]
    %v68 = vld [vmem:[%s2 + $0x90] sm:$0xff]
    %v69 = vld [vmem:[%s2 + $0x98] sm:$0xff]
    %v70 = vld [vmem:[%s2 + $0xa0] sm:$0xff]
    %v71 = vld [vmem:[%s2 + $0xa8] sm:$0xff]
    %v72 = vld [vmem:[%s2 + $0xb0] sm:$0xff]
    %v73 = vld [vmem:[%s2 + $0xb8] sm:$0xff]
    %v74 = vld [vmem:[%s2 + $0xc0] sm:$0xff]
    %v75 = vld [vmem:[%s2 + $0xc8] sm:$0xff]
    %v76 = vld [vmem:[%s2 + $0xd0] sm:$0xff]
    %v77 = vld [vmem:[%s2 + $0xd8] sm:$0xff]
    %v78 = vld [vmem:[%s2 + $0xe0] sm:$0xff]
    %v79 = vld [vmem:[%s2 + $0xe8] sm:$0xff]
    %v80 = vld [vmem:[%s2 + $0xf0] sm:$0xff]
    %v81 = vld [vmem:[%s2 + $0xf8] sm:$0xff]
    %v82 = vld [vmem:[%s3] sm:$0x1]
    %v83 = vld [vmem:[%s3 + $0x1] sm:$0x1]
    %v84 = vld [vmem:[%s3 + $0x2] sm:$0x1]
    %v85 = vld [vmem:[%s3 + $0x3] sm:$0x1]
    %v86 = vld [vmem:[%s3 + $0x4] sm:$0x1]
    %v87 = vld [vmem:[%s3 + $0x5] sm:$0x1]
    %v88 = vld [vmem:[%s3 + $0x6] sm:$0x1]
    %v89 = vld [vmem:[%s3 + $0x7] sm:$0x1]
    %v98 = vlaneseq
    %v99 = vshrl.u32 %v98, 7
    %v100 = vsub.s32 0, %v99
    %v101 = vrot.slane %v82, %v100
    %v102 = vlaneseq
    %v103 = vshrl.u32 %v102, 7
    %v104 = vsub.s32 0, %v103
    %v105 = vrot.slane %v83, %v104
    %v106 = vlaneseq
    %v107 = vshrl.u32 %v106, 7
    %v108 = vsub.s32 0, %v107
    %v109 = vrot.slane %v84, %v108
    %v110 = vlaneseq
    %v111 = vshrl.u32 %v110, 7
    %v112 = vsub.s32 0, %v111
    %v113 = vrot.slane %v85, %v112
    %v114 = vlaneseq
    %v115 = vshrl.u32 %v114, 7
    %v116 = vsub.s32 0, %v115
    %v117 = vrot.slane %v86, %v116
    %v118 = vlaneseq
    %v119 = vshrl.u32 %v118, 7
    %v120 = vsub.s32 0, %v119
    %v121 = vrot.slane %v87, %v120
    %v122 = vlaneseq
    %v123 = vshrl.u32 %v122, 7
    %v124 = vsub.s32 0, %v123
    %v125 = vrot.slane %v88, %v124
    %v126 = vlaneseq
    %v127 = vshrl.u32 %v126, 7
    %v128 = vsub.s32 0, %v127
    %v129 = vrot.slane %v89, %v128
    %vm138 = vcmask 261120
    %v140 = vsel %vm138, %v48, 0
    %142 = vmatprep.subr.mxu0 0.0
    %143 = vmatpush1.msra.mxu0 0.0
    %144 = vmatprep.subr.mxu0 0.0
    %145 = vmatpush1.msra.mxu0 0.0
    %146 = vmatprep.subr.mxu0 0.0
    %147 = vmatpush1.msra.mxu0 0.0
    %148 = vmatprep.subr.mxu0 0.0
    %149 = vmatpush1.msra.mxu0 0.0
    %150 = vmatprep.subr.mxu0 0.0
    %151 = vmatpush1.msra.mxu0 0.0
    %152 = vmatprep.subr.mxu0 0.0
    %153 = vmatpush1.msra.mxu0 0.0
    %154 = vmatprep.subr.mxu0 0.0
    %155 = vmatpush1.msra.mxu0 0.0
    %156 = vmatprep.subr.mxu0 0.0
    %157 = vmatpush1.msra.mxu0 0.0
    %158 = vmatprep.subr.mxu0 0.0
    %159 = vmatpush1.msra.mxu0 0.0
    %160 = vmatprep.subr.mxu0 0.0
    %161 = vmatpush1.msra.mxu0 0.0
    %162 = vmatprep.subr.mxu0 0.0
    %163 = vmatpush1.msra.mxu0 0.0
    %164 = vmatprep.subr.mxu0 0.0
    %165 = vmatpush1.msra.mxu0 0.0
    %166 = vmatprep.subr.mxu0 0.0
    %167 = vmatpush1.msra.mxu0 %v53
    %168 = vmatprep.subr.mxu0 0.0
    %169 = vmatpush1.msra.mxu0 %v52
    %170 = vmatprep.subr.mxu0 0.0
    %171 = vmatpush1.msra.mxu0 %v51
    %172 = vmatprep.subr.mxu0 0.0
    %173 = vmatpush1.msra.mxu0 %v50
    %174 = vmatprep.subr.mxu0 0.0
    %175 = vmatpush2.msra.mxu0 0.0
    %176 = vmatprep.subr.mxu0 0.0
    %177 = vmatpush2.msra.mxu0 0.0
    %178 = vmatprep.subr.mxu0 0.0
    %179 = vmatpush2.msra.mxu0 0.0
    %180 = vmatprep.subr.mxu0 0.0
    %181 = vmatpush2.msra.mxu0 0.0
    %182 = vmatprep.subr.mxu0 0.0
    %183 = vmatpush2.msra.mxu0 0.0
    %184 = vmatprep.subr.mxu0 0.0
    %185 = vmatpush2.msra.mxu0 0.0
    %186 = vmatprep.subr.mxu0 0.0
    %187 = vmatpush2.msra.mxu0 0.0
    %188 = vmatprep.subr.mxu0 0.0
    %189 = vmatpush2.msra.mxu0 0.0
    %190 = vmatprep.subr.mxu0 0.0
    %191 = vmatpush2.msra.mxu0 0.0
    %192 = vmatprep.subr.mxu0 0.0
    %193 = vmatpush2.msra.mxu0 0.0
    %194 = vmatprep.subr.mxu0 0.0
    %195 = vmatpush2.msra.mxu0 0.0
    %196 = vmatprep.subr.mxu0 0.0
    %197 = vmatpush2.msra.mxu0 0.0
    %198 = vmatprep.subr.mxu0 0.0
    %199 = vmatpush2.msra.mxu0 0.0
    %200 = vmatprep.subr.mxu0 0.0
    %201 = vmatpush2.msra.mxu0 0.0
    %202 = vmatprep.subr.mxu0 0.0
    %203 = vmatpush2.msra.mxu0 0.0
    %204 = vmatprep.subr.mxu0 0.0
    %205 = vmatpush2.msra.mxu0 0.0
    %206 = vmatprep.mubr.f32.mxu0 0.0
    %207 = vmatmul.mubr.f32.gmra.mxu0 %v140
    %v208 = vpop.f32.mrf.mxu0
    %v209 = vadd.f32 %v101, %v208
    %v210 = vpop.f32.mrf.mxu0
    %211 = vdwg.mxu0
    %212 = vmatprep.subr.mxu0 0.0
    %213 = vmatpush1.msra.mxu0 0.0
    %214 = vmatprep.subr.mxu0 0.0
    %215 = vmatpush1.msra.mxu0 0.0
    %216 = vmatprep.subr.mxu0 0.0
    %217 = vmatpush1.msra.mxu0 0.0
    %218 = vmatprep.subr.mxu0 0.0
    %219 = vmatpush1.msra.mxu0 0.0
    %220 = vmatprep.subr.mxu0 0.0
    %221 = vmatpush1.msra.mxu0 0.0
    %222 = vmatprep.subr.mxu0 0.0
    %223 = vmatpush1.msra.mxu0 0.0
    %224 = vmatprep.subr.mxu0 0.0
    %225 = vmatpush1.msra.mxu0 0.0
    %226 = vmatprep.subr.mxu0 0.0
    %227 = vmatpush1.msra.mxu0 0.0
    %228 = vmatprep.subr.mxu0 0.0
    %229 = vmatpush1.msra.mxu0 0.0
    %230 = vmatprep.subr.mxu0 0.0
    %231 = vmatpush1.msra.mxu0 0.0
    %232 = vmatprep.subr.mxu0 0.0
    %233 = vmatpush1.msra.mxu0 0.0
    %234 = vmatprep.subr.mxu0 0.0
    %235 = vmatpush1.msra.mxu0 0.0
    %236 = vmatprep.subr.mxu0 0.0
    %237 = vmatpush1.msra.mxu0 %v57
    %238 = vmatprep.subr.mxu0 0.0
    %239 = vmatpush1.msra.mxu0 %v56
    %240 = vmatprep.subr.mxu0 0.0
    %241 = vmatpush1.msra.mxu0 %v55
    %242 = vmatprep.subr.mxu0 0.0
    %243 = vmatpush1.msra.mxu0 %v54
    %244 = vmatprep.subr.mxu0 0.0
    %245 = vmatpush2.msra.mxu0 0.0
    %246 = vmatprep.subr.mxu0 0.0
    %247 = vmatpush2.msra.mxu0 0.0
    %248 = vmatprep.subr.mxu0 0.0
    %249 = vmatpush2.msra.mxu0 0.0
    %250 = vmatprep.subr.mxu0 0.0
    %251 = vmatpush2.msra.mxu0 0.0
    %252 = vmatprep.subr.mxu0 0.0
    %253 = vmatpush2.msra.mxu0 0.0
    %254 = vmatprep.subr.mxu0 0.0
    %255 = vmatpush2.msra.mxu0 0.0
    %256 = vmatprep.subr.mxu0 0.0
    %257 = vmatpush2.msra.mxu0 0.0
    %258 = vmatprep.subr.mxu0 0.0
    %259 = vmatpush2.msra.mxu0 0.0
    %260 = vmatprep.subr.mxu0 0.0
    %261 = vmatpush2.msra.mxu0 0.0
    %262 = vmatprep.subr.mxu0 0.0
    %263 = vmatpush2.msra.mxu0 0.0
    %264 = vmatprep.subr.mxu0 0.0
    %265 = vmatpush2.msra.mxu0 0.0
    %266 = vmatprep.subr.mxu0 0.0
    %267 = vmatpush2.msra.mxu0 0.0
    %268 = vmatprep.subr.mxu0 0.0
    %269 = vmatpush2.msra.mxu0 0.0
    %270 = vmatprep.subr.mxu0 0.0
    %271 = vmatpush2.msra.mxu0 0.0
    %272 = vmatprep.subr.mxu0 0.0
    %273 = vmatpush2.msra.mxu0 0.0
    %274 = vmatprep.subr.mxu0 0.0
    %275 = vmatpush2.msra.mxu0 0.0
    %276 = vmatprep.mubr.f32.mxu0 0.0
    %277 = vmatmul.mubr.f32.gmra.mxu0 %v140
    %v278 = vpop.f32.mrf.mxu0
    %v279 = vadd.f32 %v105, %v278
    %v280 = vpop.f32.mrf.mxu0
    %281 = vdwg.mxu0
    %282 = vmatprep.subr.mxu0 0.0
    %283 = vmatpush1.msra.mxu0 0.0
    %284 = vmatprep.subr.mxu0 0.0
    %285 = vmatpush1.msra.mxu0 0.0
    %286 = vmatprep.subr.mxu0 0.0
    %287 = vmatpush1.msra.mxu0 0.0
    %288 = vmatprep.subr.mxu0 0.0
    %289 = vmatpush1.msra.mxu0 0.0
    %290 = vmatprep.subr.mxu0 0.0
    %291 = vmatpush1.msra.mxu0 0.0
    %292 = vmatprep.subr.mxu0 0.0
    %293 = vmatpush1.msra.mxu0 0.0
    %294 = vmatprep.subr.mxu0 0.0
    %295 = vmatpush1.msra.mxu0 0.0
    %296 = vmatprep.subr.mxu0 0.0
    %297 = vmatpush1.msra.mxu0 0.0
    %298 = vmatprep.subr.mxu0 0.0
    %299 = vmatpush1.msra.mxu0 0.0
    %300 = vmatprep.subr.mxu0 0.0
    %301 = vmatpush1.msra.mxu0 0.0
    %302 = vmatprep.subr.mxu0 0.0
    %303 = vmatpush1.msra.mxu0 0.0
    %304 = vmatprep.subr.mxu0 0.0
    %305 = vmatpush1.msra.mxu0 0.0
    %306 = vmatprep.subr.mxu0 0.0
    %307 = vmatpush1.msra.mxu0 %v61
    %308 = vmatprep.subr.mxu0 0.0
    %309 = vmatpush1.msra.mxu0 %v60
    %310 = vmatprep.subr.mxu0 0.0
    %311 = vmatpush1.msra.mxu0 %v59
    %312 = vmatprep.subr.mxu0 0.0
    %313 = vmatpush1.msra.mxu0 %v58
    %314 = vmatprep.subr.mxu0 0.0
    %315 = vmatpush2.msra.mxu0 0.0
    %316 = vmatprep.subr.mxu0 0.0
    %317 = vmatpush2.msra.mxu0 0.0
    %318 = vmatprep.subr.mxu0 0.0
    %319 = vmatpush2.msra.mxu0 0.0
    %320 = vmatprep.subr.mxu0 0.0
    %321 = vmatpush2.msra.mxu0 0.0
    %322 = vmatprep.subr.mxu0 0.0
    %323 = vmatpush2.msra.mxu0 0.0
    %324 = vmatprep.subr.mxu0 0.0
    %325 = vmatpush2.msra.mxu0 0.0
    %326 = vmatprep.subr.mxu0 0.0
    %327 = vmatpush2.msra.mxu0 0.0
    %328 = vmatprep.subr.mxu0 0.0
    %329 = vmatpush2.msra.mxu0 0.0
    %330 = vmatprep.subr.mxu0 0.0
    %331 = vmatpush2.msra.mxu0 0.0
    %332 = vmatprep.subr.mxu0 0.0
    %333 = vmatpush2.msra.mxu0 0.0
    %334 = vmatprep.subr.mxu0 0.0
    %335 = vmatpush2.msra.mxu0 0.0
    %336 = vmatprep.subr.mxu0 0.0
    %337 = vmatpush2.msra.mxu0 0.0
    %338 = vmatprep.subr.mxu0 0.0
    %339 = vmatpush2.msra.mxu0 0.0
    %340 = vmatprep.subr.mxu0 0.0
    %341 = vmatpush2.msra.mxu0 0.0
    %342 = vmatprep.subr.mxu0 0.0
    %343 = vmatpush2.msra.mxu0 0.0
    %344 = vmatprep.subr.mxu0 0.0
    %345 = vmatpush2.msra.mxu0 0.0
    %346 = vmatprep.mubr.f32.mxu0 0.0
    %347 = vmatmul.mubr.f32.gmra.mxu0 %v140
    %v348 = vpop.f32.mrf.mxu0
    %v349 = vadd.f32 %v109, %v348
    %v350 = vpop.f32.mrf.mxu0
    %351 = vdwg.mxu0
    %352 = vmatprep.subr.mxu0 0.0
    %353 = vmatpush1.msra.mxu0 0.0
    %354 = vmatprep.subr.mxu0 0.0
    %355 = vmatpush1.msra.mxu0 0.0
    %356 = vmatprep.subr.mxu0 0.0
    %357 = vmatpush1.msra.mxu0 0.0
    %358 = vmatprep.subr.mxu0 0.0
    %359 = vmatpush1.msra.mxu0 0.0
    %360 = vmatprep.subr.mxu0 0.0
    %361 = vmatpush1.msra.mxu0 0.0
    %362 = vmatprep.subr.mxu0 0.0
    %363 = vmatpush1.msra.mxu0 0.0
    %364 = vmatprep.subr.mxu0 0.0
    %365 = vmatpush1.msra.mxu0 0.0
    %366 = vmatprep.subr.mxu0 0.0
    %367 = vmatpush1.msra.mxu0 0.0
    %368 = vmatprep.subr.mxu0 0.0
    %369 = vmatpush1.msra.mxu0 0.0
    %370 = vmatprep.subr.mxu0 0.0
    %371 = vmatpush1.msra.mxu0 0.0
    %372 = vmatprep.subr.mxu0 0.0
    %373 = vmatpush1.msra.mxu0 0.0
    %374 = vmatprep.subr.mxu0 0.0
    %375 = vmatpush1.msra.mxu0 0.0
    %376 = vmatprep.subr.mxu0 0.0
    %377 = vmatpush1.msra.mxu0 %v65
    %378 = vmatprep.subr.mxu0 0.0
    %379 = vmatpush1.msra.mxu0 %v64
    %380 = vmatprep.subr.mxu0 0.0
    %381 = vmatpush1.msra.mxu0 %v63
    %382 = vmatprep.subr.mxu0 0.0
    %383 = vmatpush1.msra.mxu0 %v62
    %384 = vmatprep.subr.mxu0 0.0
    %385 = vmatpush2.msra.mxu0 0.0
    %386 = vmatprep.subr.mxu0 0.0
    %387 = vmatpush2.msra.mxu0 0.0
    %388 = vmatprep.subr.mxu0 0.0
    %389 = vmatpush2.msra.mxu0 0.0
    %390 = vmatprep.subr.mxu0 0.0
    %391 = vmatpush2.msra.mxu0 0.0
    %392 = vmatprep.subr.mxu0 0.0
    %393 = vmatpush2.msra.mxu0 0.0
    %394 = vmatprep.subr.mxu0 0.0
    %395 = vmatpush2.msra.mxu0 0.0
    %396 = vmatprep.subr.mxu0 0.0
    %397 = vmatpush2.msra.mxu0 0.0
    %398 = vmatprep.subr.mxu0 0.0
    %399 = vmatpush2.msra.mxu0 0.0
    %400 = vmatprep.subr.mxu0 0.0
    %401 = vmatpush2.msra.mxu0 0.0
    %402 = vmatprep.subr.mxu0 0.0
    %403 = vmatpush2.msra.mxu0 0.0
    %404 = vmatprep.subr.mxu0 0.0
    %405 = vmatpush2.msra.mxu0 0.0
    %406 = vmatprep.subr.mxu0 0.0
    %407 = vmatpush2.msra.mxu0 0.0
    %408 = vmatprep.subr.mxu0 0.0
    %409 = vmatpush2.msra.mxu0 0.0
    %410 = vmatprep.subr.mxu0 0.0
    %411 = vmatpush2.msra.mxu0 0.0
    %412 = vmatprep.subr.mxu0 0.0
    %413 = vmatpush2.msra.mxu0 0.0
    %414 = vmatprep.subr.mxu0 0.0
    %415 = vmatpush2.msra.mxu0 0.0
    %416 = vmatprep.mubr.f32.mxu0 0.0
    %417 = vmatmul.mubr.f32.gmra.mxu0 %v140
    %v418 = vpop.f32.mrf.mxu0
    %v419 = vadd.f32 %v113, %v418
    %v420 = vpop.f32.mrf.mxu0
    %421 = vdwg.mxu0
    %v423 = vsel %vm138, %v49, 0
    %425 = vmatprep.subr.mxu0 0.0
    %426 = vmatpush1.msra.mxu0 0.0
    %427 = vmatprep.subr.mxu0 0.0
    %428 = vmatpush1.msra.mxu0 0.0
    %429 = vmatprep.subr.mxu0 0.0
    %430 = vmatpush1.msra.mxu0 0.0
    %431 = vmatprep.subr.mxu0 0.0
    %432 = vmatpush1.msra.mxu0 0.0
    %433 = vmatprep.subr.mxu0 0.0
    %434 = vmatpush1.msra.mxu0 0.0
    %435 = vmatprep.subr.mxu0 0.0
    %436 = vmatpush1.msra.mxu0 0.0
    %437 = vmatprep.subr.mxu0 0.0
    %438 = vmatpush1.msra.mxu0 0.0
    %439 = vmatprep.subr.mxu0 0.0
    %440 = vmatpush1.msra.mxu0 0.0
    %441 = vmatprep.subr.mxu0 0.0
    %442 = vmatpush1.msra.mxu0 0.0
    %443 = vmatprep.subr.mxu0 0.0
    %444 = vmatpush1.msra.mxu0 0.0
    %445 = vmatprep.subr.mxu0 0.0
    %446 = vmatpush1.msra.mxu0 0.0
    %447 = vmatprep.subr.mxu0 0.0
    %448 = vmatpush1.msra.mxu0 0.0
    %449 = vmatprep.subr.mxu0 0.0
    %450 = vmatpush1.msra.mxu0 %v69
    %451 = vmatprep.subr.mxu0 0.0
    %452 = vmatpush1.msra.mxu0 %v68
    %453 = vmatprep.subr.mxu0 0.0
    %454 = vmatpush1.msra.mxu0 %v67
    %455 = vmatprep.subr.mxu0 0.0
    %456 = vmatpush1.msra.mxu0 %v66
    %457 = vmatprep.subr.mxu0 0.0
    %458 = vmatpush2.msra.mxu0 0.0
    %459 = vmatprep.subr.mxu0 0.0
    %460 = vmatpush2.msra.mxu0 0.0
    %461 = vmatprep.subr.mxu0 0.0
    %462 = vmatpush2.msra.mxu0 0.0
    %463 = vmatprep.subr.mxu0 0.0
    %464 = vmatpush2.msra.mxu0 0.0
    %465 = vmatprep.subr.mxu0 0.0
    %466 = vmatpush2.msra.mxu0 0.0
    %467 = vmatprep.subr.mxu0 0.0
    %468 = vmatpush2.msra.mxu0 0.0
    %469 = vmatprep.subr.mxu0 0.0
    %470 = vmatpush2.msra.mxu0 0.0
    %471 = vmatprep.subr.mxu0 0.0
    %472 = vmatpush2.msra.mxu0 0.0
    %473 = vmatprep.subr.mxu0 0.0
    %474 = vmatpush2.msra.mxu0 0.0
    %475 = vmatprep.subr.mxu0 0.0
    %476 = vmatpush2.msra.mxu0 0.0
    %477 = vmatprep.subr.mxu0 0.0
    %478 = vmatpush2.msra.mxu0 0.0
    %479 = vmatprep.subr.mxu0 0.0
    %480 = vmatpush2.msra.mxu0 0.0
    %481 = vmatprep.subr.mxu0 0.0
    %482 = vmatpush2.msra.mxu0 0.0
    %483 = vmatprep.subr.mxu0 0.0
    %484 = vmatpush2.msra.mxu0 0.0
    %485 = vmatprep.subr.mxu0 0.0
    %486 = vmatpush2.msra.mxu0 0.0
    %487 = vmatprep.subr.mxu0 0.0
    %488 = vmatpush2.msra.mxu0 0.0
    %489 = vmatprep.mubr.f32.mxu0 0.0
    %490 = vmatmul.mubr.f32.gmra.mxu0 %v423
    %v491 = vpop.f32.mrf.mxu0
    %v492 = vadd.f32 %v117, %v491
    %v493 = vpop.f32.mrf.mxu0
    %494 = vdwg.mxu0
    %495 = vmatprep.subr.mxu0 0.0
    %496 = vmatpush1.msra.mxu0 0.0
    %497 = vmatprep.subr.mxu0 0.0
    %498 = vmatpush1.msra.mxu0 0.0
    %499 = vmatprep.subr.mxu0 0.0
    %500 = vmatpush1.msra.mxu0 0.0
    %501 = vmatprep.subr.mxu0 0.0
    %502 = vmatpush1.msra.mxu0 0.0
    %503 = vmatprep.subr.mxu0 0.0
    %504 = vmatpush1.msra.mxu0 0.0
    %505 = vmatprep.subr.mxu0 0.0
    %506 = vmatpush1.msra.mxu0 0.0
    %507 = vmatprep.subr.mxu0 0.0
    %508 = vmatpush1.msra.mxu0 0.0
    %509 = vmatprep.subr.mxu0 0.0
    %510 = vmatpush1.msra.mxu0 0.0
    %511 = vmatprep.subr.mxu0 0.0
    %512 = vmatpush1.msra.mxu0 0.0
    %513 = vmatprep.subr.mxu0 0.0
    %514 = vmatpush1.msra.mxu0 0.0
    %515 = vmatprep.subr.mxu0 0.0
    %516 = vmatpush1.msra.mxu0 0.0
    %517 = vmatprep.subr.mxu0 0.0
    %518 = vmatpush1.msra.mxu0 0.0
    %519 = vmatprep.subr.mxu0 0.0
    %520 = vmatpush1.msra.mxu0 %v73
    %521 = vmatprep.subr.mxu0 0.0
    %522 = vmatpush1.msra.mxu0 %v72
    %523 = vmatprep.subr.mxu0 0.0
    %524 = vmatpush1.msra.mxu0 %v71
    %525 = vmatprep.subr.mxu0 0.0
    %526 = vmatpush1.msra.mxu0 %v70
    %527 = vmatprep.subr.mxu0 0.0
    %528 = vmatpush2.msra.mxu0 0.0
    %529 = vmatprep.subr.mxu0 0.0
    %530 = vmatpush2.msra.mxu0 0.0
    %531 = vmatprep.subr.mxu0 0.0
    %532 = vmatpush2.msra.mxu0 0.0
    %533 = vmatprep.subr.mxu0 0.0
    %534 = vmatpush2.msra.mxu0 0.0
    %535 = vmatprep.subr.mxu0 0.0
    %536 = vmatpush2.msra.mxu0 0.0
    %537 = vmatprep.subr.mxu0 0.0
    %538 = vmatpush2.msra.mxu0 0.0
    %539 = vmatprep.subr.mxu0 0.0
    %540 = vmatpush2.msra.mxu0 0.0
    %541 = vmatprep.subr.mxu0 0.0
    %542 = vmatpush2.msra.mxu0 0.0
    %543 = vmatprep.subr.mxu0 0.0
    %544 = vmatpush2.msra.mxu0 0.0
    %545 = vmatprep.subr.mxu0 0.0
    %546 = vmatpush2.msra.mxu0 0.0
    %547 = vmatprep.subr.mxu0 0.0
    %548 = vmatpush2.msra.mxu0 0.0
    %549 = vmatprep.subr.mxu0 0.0
    %550 = vmatpush2.msra.mxu0 0.0
    %551 = vmatprep.subr.mxu0 0.0
    %552 = vmatpush2.msra.mxu0 0.0
    %553 = vmatprep.subr.mxu0 0.0
    %554 = vmatpush2.msra.mxu0 0.0
    %555 = vmatprep.subr.mxu0 0.0
    %556 = vmatpush2.msra.mxu0 0.0
    %557 = vmatprep.subr.mxu0 0.0
    %558 = vmatpush2.msra.mxu0 0.0
    %559 = vmatprep.mubr.f32.mxu0 0.0
    %560 = vmatmul.mubr.f32.gmra.mxu0 %v423
    %v561 = vpop.f32.mrf.mxu0
    %v562 = vadd.f32 %v121, %v561
    %v563 = vpop.f32.mrf.mxu0
    %564 = vdwg.mxu0
    %565 = vmatprep.subr.mxu0 0.0
    %566 = vmatpush1.msra.mxu0 0.0
    %567 = vmatprep.subr.mxu0 0.0
    %568 = vmatpush1.msra.mxu0 0.0
    %569 = vmatprep.subr.mxu0 0.0
    %570 = vmatpush1.msra.mxu0 0.0
    %571 = vmatprep.subr.mxu0 0.0
    %572 = vmatpush1.msra.mxu0 0.0
    %573 = vmatprep.subr.mxu0 0.0
    %574 = vmatpush1.msra.mxu0 0.0
    %575 = vmatprep.subr.mxu0 0.0
    %576 = vmatpush1.msra.mxu0 0.0
    %577 = vmatprep.subr.mxu0 0.0
    %578 = vmatpush1.msra.mxu0 0.0
    %579 = vmatprep.subr.mxu0 0.0
    %580 = vmatpush1.msra.mxu0 0.0
    %581 = vmatprep.subr.mxu0 0.0
    %582 = vmatpush1.msra.mxu0 0.0
    %583 = vmatprep.subr.mxu0 0.0
    %584 = vmatpush1.msra.mxu0 0.0
    %585 = vmatprep.subr.mxu0 0.0
    %586 = vmatpush1.msra.mxu0 0.0
    %587 = vmatprep.subr.mxu0 0.0
    %588 = vmatpush1.msra.mxu0 0.0
    %589 = vmatprep.subr.mxu0 0.0
    %590 = vmatpush1.msra.mxu0 %v77
    %591 = vmatprep.subr.mxu0 0.0
    %592 = vmatpush1.msra.mxu0 %v76
    %593 = vmatprep.subr.mxu0 0.0
    %594 = vmatpush1.msra.mxu0 %v75
    %595 = vmatprep.subr.mxu0 0.0
    %596 = vmatpush1.msra.mxu0 %v74
    %597 = vmatprep.subr.mxu0 0.0
    %598 = vmatpush2.msra.mxu0 0.0
    %599 = vmatprep.subr.mxu0 0.0
    %600 = vmatpush2.msra.mxu0 0.0
    %601 = vmatprep.subr.mxu0 0.0
    %602 = vmatpush2.msra.mxu0 0.0
    %603 = vmatprep.subr.mxu0 0.0
    %604 = vmatpush2.msra.mxu0 0.0
    %605 = vmatprep.subr.mxu0 0.0
    %606 = vmatpush2.msra.mxu0 0.0
    %607 = vmatprep.subr.mxu0 0.0
    %608 = vmatpush2.msra.mxu0 0.0
    %609 = vmatprep.subr.mxu0 0.0
    %610 = vmatpush2.msra.mxu0 0.0
    %611 = vmatprep.subr.mxu0 0.0
    %612 = vmatpush2.msra.mxu0 0.0
    %613 = vmatprep.subr.mxu0 0.0
    %614 = vmatpush2.msra.mxu0 0.0
    %615 = vmatprep.subr.mxu0 0.0
    %616 = vmatpush2.msra.mxu0 0.0
    %617 = vmatprep.subr.mxu0 0.0
    %618 = vmatpush2.msra.mxu0 0.0
    %619 = vmatprep.subr.mxu0 0.0
    %620 = vmatpush2.msra.mxu0 0.0
    %621 = vmatprep.subr.mxu0 0.0
    %622 = vmatpush2.msra.mxu0 0.0
    %623 = vmatprep.subr.mxu0 0.0
    %624 = vmatpush2.msra.mxu0 0.0
    %625 = vmatprep.subr.mxu0 0.0
    %626 = vmatpush2.msra.mxu0 0.0
    %627 = vmatprep.subr.mxu0 0.0
    %628 = vmatpush2.msra.mxu0 0.0
    %629 = vmatprep.mubr.f32.mxu0 0.0
    %630 = vmatmul.mubr.f32.gmra.mxu0 %v423
    %v631 = vpop.f32.mrf.mxu0
    %v632 = vadd.f32 %v125, %v631
    %v633 = vpop.f32.mrf.mxu0
    %634 = vdwg.mxu0
    %635 = vmatprep.subr.mxu0 0.0
    %636 = vmatpush1.msra.mxu0 0.0
    %637 = vmatprep.subr.mxu0 0.0
    %638 = vmatpush1.msra.mxu0 0.0
    %639 = vmatprep.subr.mxu0 0.0
    %640 = vmatpush1.msra.mxu0 0.0
    %641 = vmatprep.subr.mxu0 0.0
    %642 = vmatpush1.msra.mxu0 0.0
    %643 = vmatprep.subr.mxu0 0.0
    %644 = vmatpush1.msra.mxu0 0.0
    %645 = vmatprep.subr.mxu0 0.0
    %646 = vmatpush1.msra.mxu0 0.0
    %647 = vmatprep.subr.mxu0 0.0
    %648 = vmatpush1.msra.mxu0 0.0
    %649 = vmatprep.subr.mxu0 0.0
    %650 = vmatpush1.msra.mxu0 0.0
    %651 = vmatprep.subr.mxu0 0.0
    %652 = vmatpush1.msra.mxu0 0.0
    %653 = vmatprep.subr.mxu0 0.0
    %654 = vmatpush1.msra.mxu0 0.0
    %655 = vmatprep.subr.mxu0 0.0
    %656 = vmatpush1.msra.mxu0 0.0
    %657 = vmatprep.subr.mxu0 0.0
    %658 = vmatpush1.msra.mxu0 0.0
    %659 = vmatprep.subr.mxu0 0.0
    %660 = vmatpush1.msra.mxu0 %v81
    %661 = vmatprep.subr.mxu0 0.0
    %662 = vmatpush1.msra.mxu0 %v80
    %663 = vmatprep.subr.mxu0 0.0
    %664 = vmatpush1.msra.mxu0 %v79
    %665 = vmatprep.subr.mxu0 0.0
    %666 = vmatpush1.msra.mxu0 %v78
    %667 = vmatprep.subr.mxu0 0.0
    %668 = vmatpush2.msra.mxu0 0.0
    %669 = vmatprep.subr.mxu0 0.0
    %670 = vmatpush2.msra.mxu0 0.0
    %671 = vmatprep.subr.mxu0 0.0
    %672 = vmatpush2.msra.mxu0 0.0
    %673 = vmatprep.subr.mxu0 0.0
    %674 = vmatpush2.msra.mxu0 0.0
    %675 = vmatprep.subr.mxu0 0.0
    %676 = vmatpush2.msra.mxu0 0.0
    %677 = vmatprep.subr.mxu0 0.0
    %678 = vmatpush2.msra.mxu0 0.0
    %679 = vmatprep.subr.mxu0 0.0
    %680 = vmatpush2.msra.mxu0 0.0
    %681 = vmatprep.subr.mxu0 0.0
    %682 = vmatpush2.msra.mxu0 0.0
    %683 = vmatprep.subr.mxu0 0.0
    %684 = vmatpush2.msra.mxu0 0.0
    %685 = vmatprep.subr.mxu0 0.0
    %686 = vmatpush2.msra.mxu0 0.0
    %687 = vmatprep.subr.mxu0 0.0
    %688 = vmatpush2.msra.mxu0 0.0
    %689 = vmatprep.subr.mxu0 0.0
    %690 = vmatpush2.msra.mxu0 0.0
    %691 = vmatprep.subr.mxu0 0.0
    %692 = vmatpush2.msra.mxu0 0.0
    %693 = vmatprep.subr.mxu0 0.0
    %694 = vmatpush2.msra.mxu0 0.0
    %695 = vmatprep.subr.mxu0 0.0
    %696 = vmatpush2.msra.mxu0 0.0
    %697 = vmatprep.subr.mxu0 0.0
    %698 = vmatpush2.msra.mxu0 0.0
    %699 = vmatprep.mubr.f32.mxu0 0.0
    %700 = vmatmul.mubr.f32.gmra.mxu0 %v423
    %v701 = vpop.f32.mrf.mxu0
    %v702 = vadd.f32 %v129, %v701
    %v703 = vpop.f32.mrf.mxu0
    %704 = vdwg.mxu0
    %v705 = vld [vmem:[%s1] sm:$0xff]
    %707 = vrot.lane.b32.xlu0 %v209, 120
    %v708 = vpop.permute.xlu0 %707
    %vm709 = vcmask 64512
    %v710 = vsel %vm709, %v209, 0
    %v712 = vsel %vm709, %v708, 0
    %714 = vmatprep.subr.mxu0 0.0
    %715 = vmatpush1.xpose.msra.mxu0 0.0
    %716 = vmatprep.subr.mxu0 0.0
    %717 = vmatpush1.xpose.msra.mxu0 0.0
    %718 = vmatprep.subr.mxu0 0.0
    %719 = vmatpush1.xpose.msra.mxu0 0.0
    %720 = vmatprep.subr.mxu0 0.0
    %721 = vmatpush1.xpose.msra.mxu0 0.0
    %722 = vmatprep.subr.mxu0 0.0
    %723 = vmatpush1.xpose.msra.mxu0 0.0
    %724 = vmatprep.subr.mxu0 0.0
    %725 = vmatpush1.xpose.msra.mxu0 0.0
    %726 = vmatprep.subr.mxu0 0.0
    %727 = vmatpush1.xpose.msra.mxu0 0.0
    %728 = vmatprep.subr.mxu0 0.0
    %729 = vmatpush1.xpose.msra.mxu0 0.0
    %730 = vmatprep.subr.mxu0 0.0
    %731 = vmatpush1.xpose.msra.mxu0 0.0
    %732 = vmatprep.subr.mxu0 0.0
    %733 = vmatpush1.xpose.msra.mxu0 0.0
    %734 = vmatprep.subr.mxu0 0.0
    %735 = vmatpush1.xpose.msra.mxu0 0.0
    %736 = vmatprep.subr.mxu0 0.0
    %737 = vmatpush1.xpose.msra.mxu0 0.0
    %738 = vmatprep.subr.mxu0 0.0
    %739 = vmatpush1.xpose.msra.mxu0 0.0
    %740 = vmatprep.subr.mxu0 0.0
    %741 = vmatpush1.xpose.msra.mxu0 0.0
    %742 = vmatprep.subr.mxu0 0.0
    %743 = vmatpush1.xpose.msra.mxu0 0.0
    %744 = vmatprep.subr.mxu0 0.0
    %745 = vmatpush1.xpose.msra.mxu0 %v712
    %746 = vmatprep.subr.mxu0 0.0
    %747 = vmatpush2.xpose.msra.mxu0 0.0
    %748 = vmatprep.subr.mxu0 0.0
    %749 = vmatpush2.xpose.msra.mxu0 0.0
    %750 = vmatprep.subr.mxu0 0.0
    %751 = vmatpush2.xpose.msra.mxu0 0.0
    %752 = vmatprep.subr.mxu0 0.0
    %753 = vmatpush2.xpose.msra.mxu0 0.0
    %754 = vmatprep.subr.mxu0 0.0
    %755 = vmatpush2.xpose.msra.mxu0 0.0
    %756 = vmatprep.subr.mxu0 0.0
    %757 = vmatpush2.xpose.msra.mxu0 0.0
    %758 = vmatprep.subr.mxu0 0.0
    %759 = vmatpush2.xpose.msra.mxu0 0.0
    %760 = vmatprep.subr.mxu0 0.0
    %761 = vmatpush2.xpose.msra.mxu0 0.0
    %762 = vmatprep.subr.mxu0 0.0
    %763 = vmatpush2.xpose.msra.mxu0 0.0
    %764 = vmatprep.subr.mxu0 0.0
    %765 = vmatpush2.xpose.msra.mxu0 0.0
    %766 = vmatprep.subr.mxu0 0.0
    %767 = vmatpush2.xpose.msra.mxu0 0.0
    %768 = vmatprep.subr.mxu0 0.0
    %769 = vmatpush2.xpose.msra.mxu0 0.0
    %770 = vmatprep.subr.mxu0 0.0
    %771 = vmatpush2.xpose.msra.mxu0 0.0
    %772 = vmatprep.subr.mxu0 0.0
    %773 = vmatpush2.xpose.msra.mxu0 0.0
    %774 = vmatprep.subr.mxu0 0.0
    %775 = vmatpush2.xpose.msra.mxu0 0.0
    %776 = vmatprep.subr.mxu0 0.0
    %777 = vmatpush2.xpose.msra.mxu0 0.0
    %778 = vmatprep.mubr.f32.mxu0 0.0
    %779 = vmatmul.mubr.f32.gmra.mxu0 %v710
    %v780 = vpop.f32.mrf.mxu0
    %v781 = vadd.f32 %v705, %v780
    %v782 = vpop.f32.mrf.mxu0
    %783 = vdwg.mxu0
    %785 = vrot.lane.b32.xlu0 %v279, 120
    %v786 = vpop.permute.xlu0 %785
    %v787 = vsel %vm709, %v279, 0
    %v789 = vsel %vm709, %v786, 0
    %791 = vmatprep.subr.mxu0 0.0
    %792 = vmatpush1.xpose.msra.mxu0 0.0
    %793 = vmatprep.subr.mxu0 0.0
    %794 = vmatpush1.xpose.msra.mxu0 0.0
    %795 = vmatprep.subr.mxu0 0.0
    %796 = vmatpush1.xpose.msra.mxu0 0.0
    %797 = vmatprep.subr.mxu0 0.0
    %798 = vmatpush1.xpose.msra.mxu0 0.0
    %799 = vmatprep.subr.mxu0 0.0
    %800 = vmatpush1.xpose.msra.mxu0 0.0
    %801 = vmatprep.subr.mxu0 0.0
    %802 = vmatpush1.xpose.msra.mxu0 0.0
    %803 = vmatprep.subr.mxu0 0.0
    %804 = vmatpush1.xpose.msra.mxu0 0.0
    %805 = vmatprep.subr.mxu0 0.0
    %806 = vmatpush1.xpose.msra.mxu0 0.0
    %807 = vmatprep.subr.mxu0 0.0
    %808 = vmatpush1.xpose.msra.mxu0 0.0
    %809 = vmatprep.subr.mxu0 0.0
    %810 = vmatpush1.xpose.msra.mxu0 0.0
    %811 = vmatprep.subr.mxu0 0.0
    %812 = vmatpush1.xpose.msra.mxu0 0.0
    %813 = vmatprep.subr.mxu0 0.0
    %814 = vmatpush1.xpose.msra.mxu0 0.0
    %815 = vmatprep.subr.mxu0 0.0
    %816 = vmatpush1.xpose.msra.mxu0 0.0
    %817 = vmatprep.subr.mxu0 0.0
    %818 = vmatpush1.xpose.msra.mxu0 0.0
    %819 = vmatprep.subr.mxu0 0.0
    %820 = vmatpush1.xpose.msra.mxu0 0.0
    %821 = vmatprep.subr.mxu0 0.0
    %822 = vmatpush1.xpose.msra.mxu0 %v789
    %823 = vmatprep.subr.mxu0 0.0
    %824 = vmatpush2.xpose.msra.mxu0 0.0
    %825 = vmatprep.subr.mxu0 0.0
    %826 = vmatpush2.xpose.msra.mxu0 0.0
    %827 = vmatprep.subr.mxu0 0.0
    %828 = vmatpush2.xpose.msra.mxu0 0.0
    %829 = vmatprep.subr.mxu0 0.0
    %830 = vmatpush2.xpose.msra.mxu0 0.0
    %831 = vmatprep.subr.mxu0 0.0
    %832 = vmatpush2.xpose.msra.mxu0 0.0
    %833 = vmatprep.subr.mxu0 0.0
    %834 = vmatpush2.xpose.msra.mxu0 0.0
    %835 = vmatprep.subr.mxu0 0.0
    %836 = vmatpush2.xpose.msra.mxu0 0.0
    %837 = vmatprep.subr.mxu0 0.0
    %838 = vmatpush2.xpose.msra.mxu0 0.0
    %839 = vmatprep.subr.mxu0 0.0
    %840 = vmatpush2.xpose.msra.mxu0 0.0
    %841 = vmatprep.subr.mxu0 0.0
    %842 = vmatpush2.xpose.msra.mxu0 0.0
    %843 = vmatprep.subr.mxu0 0.0
    %844 = vmatpush2.xpose.msra.mxu0 0.0
    %845 = vmatprep.subr.mxu0 0.0
    %846 = vmatpush2.xpose.msra.mxu0 0.0
    %847 = vmatprep.subr.mxu0 0.0
    %848 = vmatpush2.xpose.msra.mxu0 0.0
    %849 = vmatprep.subr.mxu0 0.0
    %850 = vmatpush2.xpose.msra.mxu0 0.0
    %851 = vmatprep.subr.mxu0 0.0
    %852 = vmatpush2.xpose.msra.mxu0 0.0
    %853 = vmatprep.subr.mxu0 0.0
    %854 = vmatpush2.xpose.msra.mxu0 0.0
    %855 = vmatprep.mubr.f32.mxu0 0.0
    %856 = vmatmul.mubr.f32.gmra.mxu0 %v787
    %v857 = vpop.f32.mrf.mxu0
    %v858 = vadd.f32 %v705, %v857
    %v859 = vpop.f32.mrf.mxu0
    %860 = vdwg.mxu0
    %862 = vrot.lane.b32.xlu0 %v349, 120
    %v863 = vpop.permute.xlu0 %862
    %v864 = vsel %vm709, %v349, 0
    %v866 = vsel %vm709, %v863, 0
    %868 = vmatprep.subr.mxu0 0.0
    %869 = vmatpush1.xpose.msra.mxu0 0.0
    %870 = vmatprep.subr.mxu0 0.0
    %871 = vmatpush1.xpose.msra.mxu0 0.0
    %872 = vmatprep.subr.mxu0 0.0
    %873 = vmatpush1.xpose.msra.mxu0 0.0
    %874 = vmatprep.subr.mxu0 0.0
    %875 = vmatpush1.xpose.msra.mxu0 0.0
    %876 = vmatprep.subr.mxu0 0.0
    %877 = vmatpush1.xpose.msra.mxu0 0.0
    %878 = vmatprep.subr.mxu0 0.0
    %879 = vmatpush1.xpose.msra.mxu0 0.0
    %880 = vmatprep.subr.mxu0 0.0
    %881 = vmatpush1.xpose.msra.mxu0 0.0
    %882 = vmatprep.subr.mxu0 0.0
    %883 = vmatpush1.xpose.msra.mxu0 0.0
    %884 = vmatprep.subr.mxu0 0.0
    %885 = vmatpush1.xpose.msra.mxu0 0.0
    %886 = vmatprep.subr.mxu0 0.0
    %887 = vmatpush1.xpose.msra.mxu0 0.0
    %888 = vmatprep.subr.mxu0 0.0
    %889 = vmatpush1.xpose.msra.mxu0 0.0
    %890 = vmatprep.subr.mxu0 0.0
    %891 = vmatpush1.xpose.msra.mxu0 0.0
    %892 = vmatprep.subr.mxu0 0.0
    %893 = vmatpush1.xpose.msra.mxu0 0.0
    %894 = vmatprep.subr.mxu0 0.0
    %895 = vmatpush1.xpose.msra.mxu0 0.0
    %896 = vmatprep.subr.mxu0 0.0
    %897 = vmatpush1.xpose.msra.mxu0 0.0
    %898 = vmatprep.subr.mxu0 0.0
    %899 = vmatpush1.xpose.msra.mxu0 %v866
    %900 = vmatprep.subr.mxu0 0.0
    %901 = vmatpush2.xpose.msra.mxu0 0.0
    %902 = vmatprep.subr.mxu0 0.0
    %903 = vmatpush2.xpose.msra.mxu0 0.0
    %904 = vmatprep.subr.mxu0 0.0
    %905 = vmatpush2.xpose.msra.mxu0 0.0
    %906 = vmatprep.subr.mxu0 0.0
    %907 = vmatpush2.xpose.msra.mxu0 0.0
    %908 = vmatprep.subr.mxu0 0.0
    %909 = vmatpush2.xpose.msra.mxu0 0.0
    %910 = vmatprep.subr.mxu0 0.0
    %911 = vmatpush2.xpose.msra.mxu0 0.0
    %912 = vmatprep.subr.mxu0 0.0
    %913 = vmatpush2.xpose.msra.mxu0 0.0
    %914 = vmatprep.subr.mxu0 0.0
    %915 = vmatpush2.xpose.msra.mxu0 0.0
    %916 = vmatprep.subr.mxu0 0.0
    %917 = vmatpush2.xpose.msra.mxu0 0.0
    %918 = vmatprep.subr.mxu0 0.0
    %919 = vmatpush2.xpose.msra.mxu0 0.0
    %920 = vmatprep.subr.mxu0 0.0
    %921 = vmatpush2.xpose.msra.mxu0 0.0
    %922 = vmatprep.subr.mxu0 0.0
    %923 = vmatpush2.xpose.msra.mxu0 0.0
    %924 = vmatprep.subr.mxu0 0.0
    %925 = vmatpush2.xpose.msra.mxu0 0.0
    %926 = vmatprep.subr.mxu0 0.0
    %927 = vmatpush2.xpose.msra.mxu0 0.0
    %928 = vmatprep.subr.mxu0 0.0
    %929 = vmatpush2.xpose.msra.mxu0 0.0
    %930 = vmatprep.subr.mxu0 0.0
    %931 = vmatpush2.xpose.msra.mxu0 0.0
    %932 = vmatprep.mubr.f32.mxu0 0.0
    %933 = vmatmul.mubr.f32.gmra.mxu0 %v864
    %v934 = vpop.f32.mrf.mxu0
    %v935 = vadd.f32 %v705, %v934
    %v936 = vpop.f32.mrf.mxu0
    %937 = vdwg.mxu0
    %939 = vrot.lane.b32.xlu0 %v419, 120
    %v940 = vpop.permute.xlu0 %939
    %v941 = vsel %vm709, %v419, 0
    %v943 = vsel %vm709, %v940, 0
    %945 = vmatprep.subr.mxu0 0.0
    %946 = vmatpush1.xpose.msra.mxu0 0.0
    %947 = vmatprep.subr.mxu0 0.0
    %948 = vmatpush1.xpose.msra.mxu0 0.0
    %949 = vmatprep.subr.mxu0 0.0
    %950 = vmatpush1.xpose.msra.mxu0 0.0
    %951 = vmatprep.subr.mxu0 0.0
    %952 = vmatpush1.xpose.msra.mxu0 0.0
    %953 = vmatprep.subr.mxu0 0.0
    %954 = vmatpush1.xpose.msra.mxu0 0.0
    %955 = vmatprep.subr.mxu0 0.0
    %956 = vmatpush1.xpose.msra.mxu0 0.0
    %957 = vmatprep.subr.mxu0 0.0
    %958 = vmatpush1.xpose.msra.mxu0 0.0
    %959 = vmatprep.subr.mxu0 0.0
    %960 = vmatpush1.xpose.msra.mxu0 0.0
    %961 = vmatprep.subr.mxu0 0.0
    %962 = vmatpush1.xpose.msra.mxu0 0.0
    %963 = vmatprep.subr.mxu0 0.0
    %964 = vmatpush1.xpose.msra.mxu0 0.0
    %965 = vmatprep.subr.mxu0 0.0
    %966 = vmatpush1.xpose.msra.mxu0 0.0
    %967 = vmatprep.subr.mxu0 0.0
    %968 = vmatpush1.xpose.msra.mxu0 0.0
    %969 = vmatprep.subr.mxu0 0.0
    %970 = vmatpush1.xpose.msra.mxu0 0.0
    %971 = vmatprep.subr.mxu0 0.0
    %972 = vmatpush1.xpose.msra.mxu0 0.0
    %973 = vmatprep.subr.mxu0 0.0
    %974 = vmatpush1.xpose.msra.mxu0 0.0
    %975 = vmatprep.subr.mxu0 0.0
    %976 = vmatpush1.xpose.msra.mxu0 %v943
    %977 = vmatprep.subr.mxu0 0.0
    %978 = vmatpush2.xpose.msra.mxu0 0.0
    %979 = vmatprep.subr.mxu0 0.0
    %980 = vmatpush2.xpose.msra.mxu0 0.0
    %981 = vmatprep.subr.mxu0 0.0
    %982 = vmatpush2.xpose.msra.mxu0 0.0
    %983 = vmatprep.subr.mxu0 0.0
    %984 = vmatpush2.xpose.msra.mxu0 0.0
    %985 = vmatprep.subr.mxu0 0.0
    %986 = vmatpush2.xpose.msra.mxu0 0.0
    %987 = vmatprep.subr.mxu0 0.0
    %988 = vmatpush2.xpose.msra.mxu0 0.0
    %989 = vmatprep.subr.mxu0 0.0
    %990 = vmatpush2.xpose.msra.mxu0 0.0
    %991 = vmatprep.subr.mxu0 0.0
    %992 = vmatpush2.xpose.msra.mxu0 0.0
    %993 = vmatprep.subr.mxu0 0.0
    %994 = vmatpush2.xpose.msra.mxu0 0.0
    %995 = vmatprep.subr.mxu0 0.0
    %996 = vmatpush2.xpose.msra.mxu0 0.0
    %997 = vmatprep.subr.mxu0 0.0
    %998 = vmatpush2.xpose.msra.mxu0 0.0
    %999 = vmatprep.subr.mxu0 0.0
    %1000 = vmatpush2.xpose.msra.mxu0 0.0
    %1001 = vmatprep.subr.mxu0 0.0
    %1002 = vmatpush2.xpose.msra.mxu0 0.0
    %1003 = vmatprep.subr.mxu0 0.0
    %1004 = vmatpush2.xpose.msra.mxu0 0.0
    %1005 = vmatprep.subr.mxu0 0.0
    %1006 = vmatpush2.xpose.msra.mxu0 0.0
    %1007 = vmatprep.subr.mxu0 0.0
    %1008 = vmatpush2.xpose.msra.mxu0 0.0
    %1009 = vmatprep.mubr.f32.mxu0 0.0
    %1010 = vmatmul.mubr.f32.gmra.mxu0 %v941
    %v1011 = vpop.f32.mrf.mxu0
    %v1012 = vadd.f32 %v705, %v1011
    %v1013 = vpop.f32.mrf.mxu0
    %1014 = vdwg.mxu0
    %1016 = vrot.lane.b32.xlu0 %v492, 120
    %v1017 = vpop.permute.xlu0 %1016
    %v1018 = vsel %vm709, %v492, 0
    %v1020 = vsel %vm709, %v1017, 0
    %1022 = vmatprep.subr.mxu0 0.0
    %1023 = vmatpush1.xpose.msra.mxu0 0.0
    %1024 = vmatprep.subr.mxu0 0.0
    %1025 = vmatpush1.xpose.msra.mxu0 0.0
    %1026 = vmatprep.subr.mxu0 0.0
    %1027 = vmatpush1.xpose.msra.mxu0 0.0
    %1028 = vmatprep.subr.mxu0 0.0
    %1029 = vmatpush1.xpose.msra.mxu0 0.0
    %1030 = vmatprep.subr.mxu0 0.0
    %1031 = vmatpush1.xpose.msra.mxu0 0.0
    %1032 = vmatprep.subr.mxu0 0.0
    %1033 = vmatpush1.xpose.msra.mxu0 0.0
    %1034 = vmatprep.subr.mxu0 0.0
    %1035 = vmatpush1.xpose.msra.mxu0 0.0
    %1036 = vmatprep.subr.mxu0 0.0
    %1037 = vmatpush1.xpose.msra.mxu0 0.0
    %1038 = vmatprep.subr.mxu0 0.0
    %1039 = vmatpush1.xpose.msra.mxu0 0.0
    %1040 = vmatprep.subr.mxu0 0.0
    %1041 = vmatpush1.xpose.msra.mxu0 0.0
    %1042 = vmatprep.subr.mxu0 0.0
    %1043 = vmatpush1.xpose.msra.mxu0 0.0
    %1044 = vmatprep.subr.mxu0 0.0
    %1045 = vmatpush1.xpose.msra.mxu0 0.0
    %1046 = vmatprep.subr.mxu0 0.0
    %1047 = vmatpush1.xpose.msra.mxu0 0.0
    %1048 = vmatprep.subr.mxu0 0.0
    %1049 = vmatpush1.xpose.msra.mxu0 0.0
    %1050 = vmatprep.subr.mxu0 0.0
    %1051 = vmatpush1.xpose.msra.mxu0 0.0
    %1052 = vmatprep.subr.mxu0 0.0
    %1053 = vmatpush1.xpose.msra.mxu0 %v1020
    %1054 = vmatprep.subr.mxu0 0.0
    %1055 = vmatpush2.xpose.msra.mxu0 0.0
    %1056 = vmatprep.subr.mxu0 0.0
    %1057 = vmatpush2.xpose.msra.mxu0 0.0
    %1058 = vmatprep.subr.mxu0 0.0
    %1059 = vmatpush2.xpose.msra.mxu0 0.0
    %1060 = vmatprep.subr.mxu0 0.0
    %1061 = vmatpush2.xpose.msra.mxu0 0.0
    %1062 = vmatprep.subr.mxu0 0.0
    %1063 = vmatpush2.xpose.msra.mxu0 0.0
    %1064 = vmatprep.subr.mxu0 0.0
    %1065 = vmatpush2.xpose.msra.mxu0 0.0
    %1066 = vmatprep.subr.mxu0 0.0
    %1067 = vmatpush2.xpose.msra.mxu0 0.0
    %1068 = vmatprep.subr.mxu0 0.0
    %1069 = vmatpush2.xpose.msra.mxu0 0.0
    %1070 = vmatprep.subr.mxu0 0.0
    %1071 = vmatpush2.xpose.msra.mxu0 0.0
    %1072 = vmatprep.subr.mxu0 0.0
    %1073 = vmatpush2.xpose.msra.mxu0 0.0
    %1074 = vmatprep.subr.mxu0 0.0
    %1075 = vmatpush2.xpose.msra.mxu0 0.0
    %1076 = vmatprep.subr.mxu0 0.0
    %1077 = vmatpush2.xpose.msra.mxu0 0.0
    %1078 = vmatprep.subr.mxu0 0.0
    %1079 = vmatpush2.xpose.msra.mxu0 0.0
    %1080 = vmatprep.subr.mxu0 0.0
    %1081 = vmatpush2.xpose.msra.mxu0 0.0
    %1082 = vmatprep.subr.mxu0 0.0
    %1083 = vmatpush2.xpose.msra.mxu0 0.0
    %1084 = vmatprep.subr.mxu0 0.0
    %1085 = vmatpush2.xpose.msra.mxu0 0.0
    %1086 = vmatprep.mubr.f32.mxu0 0.0
    %1087 = vmatmul.mubr.f32.gmra.mxu0 %v1018
    %v1088 = vpop.f32.mrf.mxu0
    %v1089 = vadd.f32 %v705, %v1088
    %v1090 = vpop.f32.mrf.mxu0
    %1091 = vdwg.mxu0
    %1093 = vrot.lane.b32.xlu0 %v562, 120
    %v1094 = vpop.permute.xlu0 %1093
    %v1095 = vsel %vm709, %v562, 0
    %v1097 = vsel %vm709, %v1094, 0
    %1099 = vmatprep.subr.mxu0 0.0
    %1100 = vmatpush1.xpose.msra.mxu0 0.0
    %1101 = vmatprep.subr.mxu0 0.0
    %1102 = vmatpush1.xpose.msra.mxu0 0.0
    %1103 = vmatprep.subr.mxu0 0.0
    %1104 = vmatpush1.xpose.msra.mxu0 0.0
    %1105 = vmatprep.subr.mxu0 0.0
    %1106 = vmatpush1.xpose.msra.mxu0 0.0
    %1107 = vmatprep.subr.mxu0 0.0
    %1108 = vmatpush1.xpose.msra.mxu0 0.0
    %1109 = vmatprep.subr.mxu0 0.0
    %1110 = vmatpush1.xpose.msra.mxu0 0.0
    %1111 = vmatprep.subr.mxu0 0.0
    %1112 = vmatpush1.xpose.msra.mxu0 0.0
    %1113 = vmatprep.subr.mxu0 0.0
    %1114 = vmatpush1.xpose.msra.mxu0 0.0
    %1115 = vmatprep.subr.mxu0 0.0
    %1116 = vmatpush1.xpose.msra.mxu0 0.0
    %1117 = vmatprep.subr.mxu0 0.0
    %1118 = vmatpush1.xpose.msra.mxu0 0.0
    %1119 = vmatprep.subr.mxu0 0.0
    %1120 = vmatpush1.xpose.msra.mxu0 0.0
    %1121 = vmatprep.subr.mxu0 0.0
    %1122 = vmatpush1.xpose.msra.mxu0 0.0
    %1123 = vmatprep.subr.mxu0 0.0
    %1124 = vmatpush1.xpose.msra.mxu0 0.0
    %1125 = vmatprep.subr.mxu0 0.0
    %1126 = vmatpush1.xpose.msra.mxu0 0.0
    %1127 = vmatprep.subr.mxu0 0.0
    %1128 = vmatpush1.xpose.msra.mxu0 0.0
    %1129 = vmatprep.subr.mxu0 0.0
    %1130 = vmatpush1.xpose.msra.mxu0 %v1097
    %1131 = vmatprep.subr.mxu0 0.0
    %1132 = vmatpush2.xpose.msra.mxu0 0.0
    %1133 = vmatprep.subr.mxu0 0.0
    %1134 = vmatpush2.xpose.msra.mxu0 0.0
    %1135 = vmatprep.subr.mxu0 0.0
    %1136 = vmatpush2.xpose.msra.mxu0 0.0
    %1137 = vmatprep.subr.mxu0 0.0
    %1138 = vmatpush2.xpose.msra.mxu0 0.0
    %1139 = vmatprep.subr.mxu0 0.0
    %1140 = vmatpush2.xpose.msra.mxu0 0.0
    %1141 = vmatprep.subr.mxu0 0.0
    %1142 = vmatpush2.xpose.msra.mxu0 0.0
    %1143 = vmatprep.subr.mxu0 0.0
    %1144 = vmatpush2.xpose.msra.mxu0 0.0
    %1145 = vmatprep.subr.mxu0 0.0
    %1146 = vmatpush2.xpose.msra.mxu0 0.0
    %1147 = vmatprep.subr.mxu0 0.0
    %1148 = vmatpush2.xpose.msra.mxu0 0.0
    %1149 = vmatprep.subr.mxu0 0.0
    %1150 = vmatpush2.xpose.msra.mxu0 0.0
    %1151 = vmatprep.subr.mxu0 0.0
    %1152 = vmatpush2.xpose.msra.mxu0 0.0
    %1153 = vmatprep.subr.mxu0 0.0
    %1154 = vmatpush2.xpose.msra.mxu0 0.0
    %1155 = vmatprep.subr.mxu0 0.0
    %1156 = vmatpush2.xpose.msra.mxu0 0.0
    %1157 = vmatprep.subr.mxu0 0.0
    %1158 = vmatpush2.xpose.msra.mxu0 0.0
    %1159 = vmatprep.subr.mxu0 0.0
    %1160 = vmatpush2.xpose.msra.mxu0 0.0
    %1161 = vmatprep.subr.mxu0 0.0
    %1162 = vmatpush2.xpose.msra.mxu0 0.0
    %1163 = vmatprep.mubr.f32.mxu0 0.0
    %1164 = vmatmul.mubr.f32.gmra.mxu0 %v1095
    %v1165 = vpop.f32.mrf.mxu0
    %v1166 = vadd.f32 %v705, %v1165
    %v1167 = vpop.f32.mrf.mxu0
    %1168 = vdwg.mxu0
    %1170 = vrot.lane.b32.xlu0 %v632, 120
    %v1171 = vpop.permute.xlu0 %1170
    %v1172 = vsel %vm709, %v632, 0
    %v1174 = vsel %vm709, %v1171, 0
    %1176 = vmatprep.subr.mxu0 0.0
    %1177 = vmatpush1.xpose.msra.mxu0 0.0
    %1178 = vmatprep.subr.mxu0 0.0
    %1179 = vmatpush1.xpose.msra.mxu0 0.0
    %1180 = vmatprep.subr.mxu0 0.0
    %1181 = vmatpush1.xpose.msra.mxu0 0.0
    %1182 = vmatprep.subr.mxu0 0.0
    %1183 = vmatpush1.xpose.msra.mxu0 0.0
    %1184 = vmatprep.subr.mxu0 0.0
    %1185 = vmatpush1.xpose.msra.mxu0 0.0
    %1186 = vmatprep.subr.mxu0 0.0
    %1187 = vmatpush1.xpose.msra.mxu0 0.0
    %1188 = vmatprep.subr.mxu0 0.0
    %1189 = vmatpush1.xpose.msra.mxu0 0.0
    %1190 = vmatprep.subr.mxu0 0.0
    %1191 = vmatpush1.xpose.msra.mxu0 0.0
    %1192 = vmatprep.subr.mxu0 0.0
    %1193 = vmatpush1.xpose.msra.mxu0 0.0
    %1194 = vmatprep.subr.mxu0 0.0
    %1195 = vmatpush1.xpose.msra.mxu0 0.0
    %1196 = vmatprep.subr.mxu0 0.0
    %1197 = vmatpush1.xpose.msra.mxu0 0.0
    %1198 = vmatprep.subr.mxu0 0.0
    %1199 = vmatpush1.xpose.msra.mxu0 0.0
    %1200 = vmatprep.subr.mxu0 0.0
    %1201 = vmatpush1.xpose.msra.mxu0 0.0
    %1202 = vmatprep.subr.mxu0 0.0
    %1203 = vmatpush1.xpose.msra.mxu0 0.0
    %1204 = vmatprep.subr.mxu0 0.0
    %1205 = vmatpush1.xpose.msra.mxu0 0.0
    %1206 = vmatprep.subr.mxu0 0.0
    %1207 = vmatpush1.xpose.msra.mxu0 %v1174
    %1208 = vmatprep.subr.mxu0 0.0
    %1209 = vmatpush2.xpose.msra.mxu0 0.0
    %1210 = vmatprep.subr.mxu0 0.0
    %1211 = vmatpush2.xpose.msra.mxu0 0.0
    %1212 = vmatprep.subr.mxu0 0.0
    %1213 = vmatpush2.xpose.msra.mxu0 0.0
    %1214 = vmatprep.subr.mxu0 0.0
    %1215 = vmatpush2.xpose.msra.mxu0 0.0
    %1216 = vmatprep.subr.mxu0 0.0
    %1217 = vmatpush2.xpose.msra.mxu0 0.0
    %1218 = vmatprep.subr.mxu0 0.0
    %1219 = vmatpush2.xpose.msra.mxu0 0.0
    %1220 = vmatprep.subr.mxu0 0.0
    %1221 = vmatpush2.xpose.msra.mxu0 0.0
    %1222 = vmatprep.subr.mxu0 0.0
    %1223 = vmatpush2.xpose.msra.mxu0 0.0
    %1224 = vmatprep.subr.mxu0 0.0
    %1225 = vmatpush2.xpose.msra.mxu0 0.0
    %1226 = vmatprep.subr.mxu0 0.0
    %1227 = vmatpush2.xpose.msra.mxu0 0.0
    %1228 = vmatprep.subr.mxu0 0.0
    %1229 = vmatpush2.xpose.msra.mxu0 0.0
    %1230 = vmatprep.subr.mxu0 0.0
    %1231 = vmatpush2.xpose.msra.mxu0 0.0
    %1232 = vmatprep.subr.mxu0 0.0
    %1233 = vmatpush2.xpose.msra.mxu0 0.0
    %1234 = vmatprep.subr.mxu0 0.0
    %1235 = vmatpush2.xpose.msra.mxu0 0.0
    %1236 = vmatprep.subr.mxu0 0.0
    %1237 = vmatpush2.xpose.msra.mxu0 0.0
    %1238 = vmatprep.subr.mxu0 0.0
    %1239 = vmatpush2.xpose.msra.mxu0 0.0
    %1240 = vmatprep.mubr.f32.mxu0 0.0
    %1241 = vmatmul.mubr.f32.gmra.mxu0 %v1172
    %v1242 = vpop.f32.mrf.mxu0
    %v1243 = vadd.f32 %v705, %v1242
    %v1244 = vpop.f32.mrf.mxu0
    %1245 = vdwg.mxu0
    %1247 = vrot.lane.b32.xlu0 %v702, 120
    %v1248 = vpop.permute.xlu0 %1247
    %v1249 = vsel %vm709, %v702, 0
    %v1251 = vsel %vm709, %v1248, 0
    %1253 = vmatprep.subr.mxu0 0.0
    %1254 = vmatpush1.xpose.msra.mxu0 0.0
    %1255 = vmatprep.subr.mxu0 0.0
    %1256 = vmatpush1.xpose.msra.mxu0 0.0
    %1257 = vmatprep.subr.mxu0 0.0
    %1258 = vmatpush1.xpose.msra.mxu0 0.0
    %1259 = vmatprep.subr.mxu0 0.0
    %1260 = vmatpush1.xpose.msra.mxu0 0.0
    %1261 = vmatprep.subr.mxu0 0.0
    %1262 = vmatpush1.xpose.msra.mxu0 0.0
    %1263 = vmatprep.subr.mxu0 0.0
    %1264 = vmatpush1.xpose.msra.mxu0 0.0
    %1265 = vmatprep.subr.mxu0 0.0
    %1266 = vmatpush1.xpose.msra.mxu0 0.0
    %1267 = vmatprep.subr.mxu0 0.0
    %1268 = vmatpush1.xpose.msra.mxu0 0.0
    %1269 = vmatprep.subr.mxu0 0.0
    %1270 = vmatpush1.xpose.msra.mxu0 0.0
    %1271 = vmatprep.subr.mxu0 0.0
    %1272 = vmatpush1.xpose.msra.mxu0 0.0
    %1273 = vmatprep.subr.mxu0 0.0
    %1274 = vmatpush1.xpose.msra.mxu0 0.0
    %1275 = vmatprep.subr.mxu0 0.0
    %1276 = vmatpush1.xpose.msra.mxu0 0.0
    %1277 = vmatprep.subr.mxu0 0.0
    %1278 = vmatpush1.xpose.msra.mxu0 0.0
    %1279 = vmatprep.subr.mxu0 0.0
    %1280 = vmatpush1.xpose.msra.mxu0 0.0
    %1281 = vmatprep.subr.mxu0 0.0
    %1282 = vmatpush1.xpose.msra.mxu0 0.0
    %1283 = vmatprep.subr.mxu0 0.0
    %1284 = vmatpush1.xpose.msra.mxu0 %v1251
    %1285 = vmatprep.subr.mxu0 0.0
    %1286 = vmatpush2.xpose.msra.mxu0 0.0
    %1287 = vmatprep.subr.mxu0 0.0
    %1288 = vmatpush2.xpose.msra.mxu0 0.0
    %1289 = vmatprep.subr.mxu0 0.0
    %1290 = vmatpush2.xpose.msra.mxu0 0.0
    %1291 = vmatprep.subr.mxu0 0.0
    %1292 = vmatpush2.xpose.msra.mxu0 0.0
    %1293 = vmatprep.subr.mxu0 0.0
    %1294 = vmatpush2.xpose.msra.mxu0 0.0
    %1295 = vmatprep.subr.mxu0 0.0
    %1296 = vmatpush2.xpose.msra.mxu0 0.0
    %1297 = vmatprep.subr.mxu0 0.0
    %1298 = vmatpush2.xpose.msra.mxu0 0.0
    %1299 = vmatprep.subr.mxu0 0.0
    %1300 = vmatpush2.xpose.msra.mxu0 0.0
    %1301 = vmatprep.subr.mxu0 0.0
    %1302 = vmatpush2.xpose.msra.mxu0 0.0
    %1303 = vmatprep.subr.mxu0 0.0
    %1304 = vmatpush2.xpose.msra.mxu0 0.0
    %1305 = vmatprep.subr.mxu0 0.0
    %1306 = vmatpush2.xpose.msra.mxu0 0.0
    %1307 = vmatprep.subr.mxu0 0.0
    %1308 = vmatpush2.xpose.msra.mxu0 0.0
    %1309 = vmatprep.subr.mxu0 0.0
    %1310 = vmatpush2.xpose.msra.mxu0 0.0
    %1311 = vmatprep.subr.mxu0 0.0
    %1312 = vmatpush2.xpose.msra.mxu0 0.0
    %1313 = vmatprep.subr.mxu0 0.0
    %1314 = vmatpush2.xpose.msra.mxu0 0.0
    %1315 = vmatprep.subr.mxu0 0.0
    %1316 = vmatpush2.xpose.msra.mxu0 0.0
    %1317 = vmatprep.mubr.f32.mxu0 0.0
    %1318 = vmatmul.mubr.f32.gmra.mxu0 %v1249
    %v1319 = vpop.f32.mrf.mxu0
    %v1320 = vadd.f32 %v705, %v1319
    %v1321 = vpop.f32.mrf.mxu0
    %1322 = vdwg.mxu0
    %v1323 = vsel %vm709, %v781, -inf
    %1324 = vmax.xlane.f32.xlu0 %v1323
    %v1325 = vpop.xlane.xlu0 %1324
    %v1326 = vsel %vm709, %v858, -inf
    %1327 = vmax.xlane.f32.xlu0 %v1326
    %v1328 = vpop.xlane.xlu0 %1327
    %v1329 = vsel %vm709, %v935, -inf
    %1330 = vmax.xlane.f32.xlu0 %v1329
    %v1331 = vpop.xlane.xlu0 %1330
    %v1332 = vsel %vm709, %v1012, -inf
    %1333 = vmax.xlane.f32.xlu0 %v1332
    %v1334 = vpop.xlane.xlu0 %1333
    %v1335 = vsel %vm709, %v1089, -inf
    %1336 = vmax.xlane.f32.xlu0 %v1335
    %v1337 = vpop.xlane.xlu0 %1336
    %v1338 = vsel %vm709, %v1166, -inf
    %1339 = vmax.xlane.f32.xlu0 %v1338
    %v1340 = vpop.xlane.xlu0 %1339
    %v1341 = vsel %vm709, %v1243, -inf
    %1342 = vmax.xlane.f32.xlu0 %v1341
    %v1343 = vpop.xlane.xlu0 %1342
    %v1344 = vsel %vm709, %v1320, -inf
    %1345 = vmax.xlane.f32.xlu0 %v1344
    %v1346 = vpop.xlane.xlu0 %1345
    %v1347 = vsub.f32 %v781, %v1325
    %v1348 = vsub.f32 %v858, %v1328
    %v1349 = vsub.f32 %v935, %v1331
    %v1350 = vsub.f32 %v1012, %v1334
    %v1351 = vsub.f32 %v1089, %v1337
    %v1352 = vsub.f32 %v1166, %v1340
    %v1353 = vsub.f32 %v1243, %v1343
    %v1354 = vsub.f32 %v1320, %v1346
    %v1355 = vmul.f32 %v1347, 1.442695
    %v1356 = vpow.pop %v1355
    %v1357 = vmul.f32 %v1348, 1.442695
    %v1358 = vpow.pop %v1357
    %v1359 = vmul.f32 %v1349, 1.442695
    %v1360 = vpow.pop %v1359
    %v1361 = vmul.f32 %v1350, 1.442695
    %v1362 = vpow.pop %v1361
    %v1363 = vmul.f32 %v1351, 1.442695
    %v1364 = vpow.pop %v1363
    %v1365 = vmul.f32 %v1352, 1.442695
    %v1366 = vpow.pop %v1365
    %v1367 = vmul.f32 %v1353, 1.442695
    %v1368 = vpow.pop %v1367
    %v1369 = vmul.f32 %v1354, 1.442695
    %v1370 = vpow.pop %v1369
    %v1371 = vsel %vm709, %v1356, 0.0
    %1372 = vadd.xlane.f32.xlu0 %v1371
    %v1373 = vpop.xlane.xlu0 %1372
    %v1374 = vsel %vm709, %v1358, 0.0
    %1375 = vadd.xlane.f32.xlu0 %v1374
    %v1376 = vpop.xlane.xlu0 %1375
    %v1377 = vsel %vm709, %v1360, 0.0
    %1378 = vadd.xlane.f32.xlu0 %v1377
    %v1379 = vpop.xlane.xlu0 %1378
    %v1380 = vsel %vm709, %v1362, 0.0
    %1381 = vadd.xlane.f32.xlu0 %v1380
    %v1382 = vpop.xlane.xlu0 %1381
    %v1383 = vsel %vm709, %v1364, 0.0
    %1384 = vadd.xlane.f32.xlu0 %v1383
    %v1385 = vpop.xlane.xlu0 %1384
    %v1386 = vsel %vm709, %v1366, 0.0
    %1387 = vadd.xlane.f32.xlu0 %v1386
    %v1388 = vpop.xlane.xlu0 %1387
    %v1389 = vsel %vm709, %v1368, 0.0
    %1390 = vadd.xlane.f32.xlu0 %v1389
    %v1391 = vpop.xlane.xlu0 %1390
    %v1392 = vsel %vm709, %v1370, 0.0
    %1393 = vadd.xlane.f32.xlu0 %v1392
    %v1394 = vpop.xlane.xlu0 %1393
    %v1395 = vrcp.pop %v1373
    %v1396 = vrcp.pop %v1376
    %v1397 = vrcp.pop %v1379
    %v1398 = vrcp.pop %v1382
    %v1399 = vrcp.pop %v1385
    %v1400 = vrcp.pop %v1388
    %v1401 = vrcp.pop %v1391
    %v1402 = vrcp.pop %v1394
    %v1403 = vmul.f32 %v1356, %v1395
    %v1404 = vmul.f32 %v1358, %v1396
    %v1405 = vmul.f32 %v1360, %v1397
    %v1406 = vmul.f32 %v1362, %v1398
    %v1407 = vmul.f32 %v1364, %v1399
    %v1408 = vmul.f32 %v1366, %v1400
    %v1409 = vmul.f32 %v1368, %v1401
    %v1410 = vmul.f32 %v1370, %v1402
    %1411 = vrot.lane.b32.xlu0 %v209, 112
    %v1412 = vpop.permute.xlu0 %1411
    %v1415 = vsel %vm709, %v1403, 0
    %1417 = vmatprep.subr.mxu0 0.0
    %1418 = vmatpush1.msra.mxu0 0.0
    %1419 = vmatprep.subr.mxu0 0.0
    %1420 = vmatpush1.msra.mxu0 0.0
    %1421 = vmatprep.subr.mxu0 0.0
    %1422 = vmatpush1.msra.mxu0 0.0
    %1423 = vmatprep.subr.mxu0 0.0
    %1424 = vmatpush1.msra.mxu0 0.0
    %1425 = vmatprep.subr.mxu0 0.0
    %1426 = vmatpush1.msra.mxu0 0.0
    %1427 = vmatprep.subr.mxu0 0.0
    %1428 = vmatpush1.msra.mxu0 0.0
    %1429 = vmatprep.subr.mxu0 0.0
    %1430 = vmatpush1.msra.mxu0 0.0
    %1431 = vmatprep.subr.mxu0 0.0
    %1432 = vmatpush1.msra.mxu0 0.0
    %1433 = vmatprep.subr.mxu0 0.0
    %1434 = vmatpush1.msra.mxu0 0.0
    %1435 = vmatprep.subr.mxu0 0.0
    %1436 = vmatpush1.msra.mxu0 0.0
    %1437 = vmatprep.subr.mxu0 0.0
    %1438 = vmatpush1.msra.mxu0 0.0
    %1439 = vmatprep.subr.mxu0 0.0
    %1440 = vmatpush1.msra.mxu0 0.0
    %1441 = vmatprep.subr.mxu0 0.0
    %1442 = vmatpush1.msra.mxu0 0.0
    %1443 = vmatprep.subr.mxu0 0.0
    %1444 = vmatpush1.msra.mxu0 0.0
    %1445 = vmatprep.subr.mxu0 0.0
    %1446 = vmatpush1.msra.mxu0 0.0
    %1447 = vmatprep.subr.mxu0 0.0
    %1448 = vmatpush1.msra.mxu0 %v1412
    %1449 = vmatprep.subr.mxu0 0.0
    %1450 = vmatpush2.msra.mxu0 0.0
    %1451 = vmatprep.subr.mxu0 0.0
    %1452 = vmatpush2.msra.mxu0 0.0
    %1453 = vmatprep.subr.mxu0 0.0
    %1454 = vmatpush2.msra.mxu0 0.0
    %1455 = vmatprep.subr.mxu0 0.0
    %1456 = vmatpush2.msra.mxu0 0.0
    %1457 = vmatprep.subr.mxu0 0.0
    %1458 = vmatpush2.msra.mxu0 0.0
    %1459 = vmatprep.subr.mxu0 0.0
    %1460 = vmatpush2.msra.mxu0 0.0
    %1461 = vmatprep.subr.mxu0 0.0
    %1462 = vmatpush2.msra.mxu0 0.0
    %1463 = vmatprep.subr.mxu0 0.0
    %1464 = vmatpush2.msra.mxu0 0.0
    %1465 = vmatprep.subr.mxu0 0.0
    %1466 = vmatpush2.msra.mxu0 0.0
    %1467 = vmatprep.subr.mxu0 0.0
    %1468 = vmatpush2.msra.mxu0 0.0
    %1469 = vmatprep.subr.mxu0 0.0
    %1470 = vmatpush2.msra.mxu0 0.0
    %1471 = vmatprep.subr.mxu0 0.0
    %1472 = vmatpush2.msra.mxu0 0.0
    %1473 = vmatprep.subr.mxu0 0.0
    %1474 = vmatpush2.msra.mxu0 0.0
    %1475 = vmatprep.subr.mxu0 0.0
    %1476 = vmatpush2.msra.mxu0 0.0
    %1477 = vmatprep.subr.mxu0 0.0
    %1478 = vmatpush2.msra.mxu0 0.0
    %1479 = vmatprep.subr.mxu0 0.0
    %1480 = vmatpush2.msra.mxu0 0.0
    %1481 = vmatprep.mubr.f32.mxu0 0.0
    %1482 = vmatmul.mubr.f32.gmra.mxu0 %v1415
    %v1483 = vpop.f32.mrf.mxu0
    %v1484 = vadd.f32 0.0, %v1483
    %v1485 = vpop.f32.mrf.mxu0
    %1486 = vdwg.mxu0
    %1487 = vrot.lane.b32.xlu0 %v279, 112
    %v1488 = vpop.permute.xlu0 %1487
    %v1491 = vsel %vm709, %v1404, 0
    %1493 = vmatprep.subr.mxu0 0.0
    %1494 = vmatpush1.msra.mxu0 0.0
    %1495 = vmatprep.subr.mxu0 0.0
    %1496 = vmatpush1.msra.mxu0 0.0
    %1497 = vmatprep.subr.mxu0 0.0
    %1498 = vmatpush1.msra.mxu0 0.0
    %1499 = vmatprep.subr.mxu0 0.0
    %1500 = vmatpush1.msra.mxu0 0.0
    %1501 = vmatprep.subr.mxu0 0.0
    %1502 = vmatpush1.msra.mxu0 0.0
    %1503 = vmatprep.subr.mxu0 0.0
    %1504 = vmatpush1.msra.mxu0 0.0
    %1505 = vmatprep.subr.mxu0 0.0
    %1506 = vmatpush1.msra.mxu0 0.0
    %1507 = vmatprep.subr.mxu0 0.0
    %1508 = vmatpush1.msra.mxu0 0.0
    %1509 = vmatprep.subr.mxu0 0.0
    %1510 = vmatpush1.msra.mxu0 0.0
    %1511 = vmatprep.subr.mxu0 0.0
    %1512 = vmatpush1.msra.mxu0 0.0
    %1513 = vmatprep.subr.mxu0 0.0
    %1514 = vmatpush1.msra.mxu0 0.0
    %1515 = vmatprep.subr.mxu0 0.0
    %1516 = vmatpush1.msra.mxu0 0.0
    %1517 = vmatprep.subr.mxu0 0.0
    %1518 = vmatpush1.msra.mxu0 0.0
    %1519 = vmatprep.subr.mxu0 0.0
    %1520 = vmatpush1.msra.mxu0 0.0
    %1521 = vmatprep.subr.mxu0 0.0
    %1522 = vmatpush1.msra.mxu0 0.0
    %1523 = vmatprep.subr.mxu0 0.0
    %1524 = vmatpush1.msra.mxu0 %v1488
    %1525 = vmatprep.subr.mxu0 0.0
    %1526 = vmatpush2.msra.mxu0 0.0
    %1527 = vmatprep.subr.mxu0 0.0
    %1528 = vmatpush2.msra.mxu0 0.0
    %1529 = vmatprep.subr.mxu0 0.0
    %1530 = vmatpush2.msra.mxu0 0.0
    %1531 = vmatprep.subr.mxu0 0.0
    %1532 = vmatpush2.msra.mxu0 0.0
    %1533 = vmatprep.subr.mxu0 0.0
    %1534 = vmatpush2.msra.mxu0 0.0
    %1535 = vmatprep.subr.mxu0 0.0
    %1536 = vmatpush2.msra.mxu0 0.0
    %1537 = vmatprep.subr.mxu0 0.0
    %1538 = vmatpush2.msra.mxu0 0.0
    %1539 = vmatprep.subr.mxu0 0.0
    %1540 = vmatpush2.msra.mxu0 0.0
    %1541 = vmatprep.subr.mxu0 0.0
    %1542 = vmatpush2.msra.mxu0 0.0
    %1543 = vmatprep.subr.mxu0 0.0
    %1544 = vmatpush2.msra.mxu0 0.0
    %1545 = vmatprep.subr.mxu0 0.0
    %1546 = vmatpush2.msra.mxu0 0.0
    %1547 = vmatprep.subr.mxu0 0.0
    %1548 = vmatpush2.msra.mxu0 0.0
    %1549 = vmatprep.subr.mxu0 0.0
    %1550 = vmatpush2.msra.mxu0 0.0
    %1551 = vmatprep.subr.mxu0 0.0
    %1552 = vmatpush2.msra.mxu0 0.0
    %1553 = vmatprep.subr.mxu0 0.0
    %1554 = vmatpush2.msra.mxu0 0.0
    %1555 = vmatprep.subr.mxu0 0.0
    %1556 = vmatpush2.msra.mxu0 0.0
    %1557 = vmatprep.mubr.f32.mxu0 0.0
    %1558 = vmatmul.mubr.f32.gmra.mxu0 %v1491
    %v1559 = vpop.f32.mrf.mxu0
    %v1560 = vadd.f32 0.0, %v1559
    %v1561 = vpop.f32.mrf.mxu0
    %1562 = vdwg.mxu0
    %1563 = vrot.lane.b32.xlu0 %v349, 112
    %v1564 = vpop.permute.xlu0 %1563
    %v1567 = vsel %vm709, %v1405, 0
    %1569 = vmatprep.subr.mxu0 0.0
    %1570 = vmatpush1.msra.mxu0 0.0
    %1571 = vmatprep.subr.mxu0 0.0
    %1572 = vmatpush1.msra.mxu0 0.0
    %1573 = vmatprep.subr.mxu0 0.0
    %1574 = vmatpush1.msra.mxu0 0.0
    %1575 = vmatprep.subr.mxu0 0.0
    %1576 = vmatpush1.msra.mxu0 0.0
    %1577 = vmatprep.subr.mxu0 0.0
    %1578 = vmatpush1.msra.mxu0 0.0
    %1579 = vmatprep.subr.mxu0 0.0
    %1580 = vmatpush1.msra.mxu0 0.0
    %1581 = vmatprep.subr.mxu0 0.0
    %1582 = vmatpush1.msra.mxu0 0.0
    %1583 = vmatprep.subr.mxu0 0.0
    %1584 = vmatpush1.msra.mxu0 0.0
    %1585 = vmatprep.subr.mxu0 0.0
    %1586 = vmatpush1.msra.mxu0 0.0
    %1587 = vmatprep.subr.mxu0 0.0
    %1588 = vmatpush1.msra.mxu0 0.0
    %1589 = vmatprep.subr.mxu0 0.0
    %1590 = vmatpush1.msra.mxu0 0.0
    %1591 = vmatprep.subr.mxu0 0.0
    %1592 = vmatpush1.msra.mxu0 0.0
    %1593 = vmatprep.subr.mxu0 0.0
    %1594 = vmatpush1.msra.mxu0 0.0
    %1595 = vmatprep.subr.mxu0 0.0
    %1596 = vmatpush1.msra.mxu0 0.0
    %1597 = vmatprep.subr.mxu0 0.0
    %1598 = vmatpush1.msra.mxu0 0.0
    %1599 = vmatprep.subr.mxu0 0.0
    %1600 = vmatpush1.msra.mxu0 %v1564
    %1601 = vmatprep.subr.mxu0 0.0
    %1602 = vmatpush2.msra.mxu0 0.0
    %1603 = vmatprep.subr.mxu0 0.0
    %1604 = vmatpush2.msra.mxu0 0.0
    %1605 = vmatprep.subr.mxu0 0.0
    %1606 = vmatpush2.msra.mxu0 0.0
    %1607 = vmatprep.subr.mxu0 0.0
    %1608 = vmatpush2.msra.mxu0 0.0
    %1609 = vmatprep.subr.mxu0 0.0
    %1610 = vmatpush2.msra.mxu0 0.0
    %1611 = vmatprep.subr.mxu0 0.0
    %1612 = vmatpush2.msra.mxu0 0.0
    %1613 = vmatprep.subr.mxu0 0.0
    %1614 = vmatpush2.msra.mxu0 0.0
    %1615 = vmatprep.subr.mxu0 0.0
    %1616 = vmatpush2.msra.mxu0 0.0
    %1617 = vmatprep.subr.mxu0 0.0
    %1618 = vmatpush2.msra.mxu0 0.0
    %1619 = vmatprep.subr.mxu0 0.0
    %1620 = vmatpush2.msra.mxu0 0.0
    %1621 = vmatprep.subr.mxu0 0.0
    %1622 = vmatpush2.msra.mxu0 0.0
    %1623 = vmatprep.subr.mxu0 0.0
    %1624 = vmatpush2.msra.mxu0 0.0
    %1625 = vmatprep.subr.mxu0 0.0
    %1626 = vmatpush2.msra.mxu0 0.0
    %1627 = vmatprep.subr.mxu0 0.0
    %1628 = vmatpush2.msra.mxu0 0.0
    %1629 = vmatprep.subr.mxu0 0.0
    %1630 = vmatpush2.msra.mxu0 0.0
    %1631 = vmatprep.subr.mxu0 0.0
    %1632 = vmatpush2.msra.mxu0 0.0
    %1633 = vmatprep.mubr.f32.mxu0 0.0
    %1634 = vmatmul.mubr.f32.gmra.mxu0 %v1567
    %v1635 = vpop.f32.mrf.mxu0
    %v1636 = vadd.f32 0.0, %v1635
    %v1637 = vpop.f32.mrf.mxu0
    %1638 = vdwg.mxu0
    %1639 = vrot.lane.b32.xlu0 %v419, 112
    %v1640 = vpop.permute.xlu0 %1639
    %v1643 = vsel %vm709, %v1406, 0
    %1645 = vmatprep.subr.mxu0 0.0
    %1646 = vmatpush1.msra.mxu0 0.0
    %1647 = vmatprep.subr.mxu0 0.0
    %1648 = vmatpush1.msra.mxu0 0.0
    %1649 = vmatprep.subr.mxu0 0.0
    %1650 = vmatpush1.msra.mxu0 0.0
    %1651 = vmatprep.subr.mxu0 0.0
    %1652 = vmatpush1.msra.mxu0 0.0
    %1653 = vmatprep.subr.mxu0 0.0
    %1654 = vmatpush1.msra.mxu0 0.0
    %1655 = vmatprep.subr.mxu0 0.0
    %1656 = vmatpush1.msra.mxu0 0.0
    %1657 = vmatprep.subr.mxu0 0.0
    %1658 = vmatpush1.msra.mxu0 0.0
    %1659 = vmatprep.subr.mxu0 0.0
    %1660 = vmatpush1.msra.mxu0 0.0
    %1661 = vmatprep.subr.mxu0 0.0
    %1662 = vmatpush1.msra.mxu0 0.0
    %1663 = vmatprep.subr.mxu0 0.0
    %1664 = vmatpush1.msra.mxu0 0.0
    %1665 = vmatprep.subr.mxu0 0.0
    %1666 = vmatpush1.msra.mxu0 0.0
    %1667 = vmatprep.subr.mxu0 0.0
    %1668 = vmatpush1.msra.mxu0 0.0
    %1669 = vmatprep.subr.mxu0 0.0
    %1670 = vmatpush1.msra.mxu0 0.0
    %1671 = vmatprep.subr.mxu0 0.0
    %1672 = vmatpush1.msra.mxu0 0.0
    %1673 = vmatprep.subr.mxu0 0.0
    %1674 = vmatpush1.msra.mxu0 0.0
    %1675 = vmatprep.subr.mxu0 0.0
    %1676 = vmatpush1.msra.mxu0 %v1640
    %1677 = vmatprep.subr.mxu0 0.0
    %1678 = vmatpush2.msra.mxu0 0.0
    %1679 = vmatprep.subr.mxu0 0.0
    %1680 = vmatpush2.msra.mxu0 0.0
    %1681 = vmatprep.subr.mxu0 0.0
    %1682 = vmatpush2.msra.mxu0 0.0
    %1683 = vmatprep.subr.mxu0 0.0
    %1684 = vmatpush2.msra.mxu0 0.0
    %1685 = vmatprep.subr.mxu0 0.0
    %1686 = vmatpush2.msra.mxu0 0.0
    %1687 = vmatprep.subr.mxu0 0.0
    %1688 = vmatpush2.msra.mxu0 0.0
    %1689 = vmatprep.subr.mxu0 0.0
    %1690 = vmatpush2.msra.mxu0 0.0
    %1691 = vmatprep.subr.mxu0 0.0
    %1692 = vmatpush2.msra.mxu0 0.0
    %1693 = vmatprep.subr.mxu0 0.0
    %1694 = vmatpush2.msra.mxu0 0.0
    %1695 = vmatprep.subr.mxu0 0.0
    %1696 = vmatpush2.msra.mxu0 0.0
    %1697 = vmatprep.subr.mxu0 0.0
    %1698 = vmatpush2.msra.mxu0 0.0
    %1699 = vmatprep.subr.mxu0 0.0
    %1700 = vmatpush2.msra.mxu0 0.0
    %1701 = vmatprep.subr.mxu0 0.0
    %1702 = vmatpush2.msra.mxu0 0.0
    %1703 = vmatprep.subr.mxu0 0.0
    %1704 = vmatpush2.msra.mxu0 0.0
    %1705 = vmatprep.subr.mxu0 0.0
    %1706 = vmatpush2.msra.mxu0 0.0
    %1707 = vmatprep.subr.mxu0 0.0
    %1708 = vmatpush2.msra.mxu0 0.0
    %1709 = vmatprep.mubr.f32.mxu0 0.0
    %1710 = vmatmul.mubr.f32.gmra.mxu0 %v1643
    %v1711 = vpop.f32.mrf.mxu0
    %v1712 = vadd.f32 0.0, %v1711
    %v1713 = vpop.f32.mrf.mxu0
    %1714 = vdwg.mxu0
    %1715 = vrot.lane.b32.xlu0 %v492, 112
    %v1716 = vpop.permute.xlu0 %1715
    %v1719 = vsel %vm709, %v1407, 0
    %1721 = vmatprep.subr.mxu0 0.0
    %1722 = vmatpush1.msra.mxu0 0.0
    %1723 = vmatprep.subr.mxu0 0.0
    %1724 = vmatpush1.msra.mxu0 0.0
    %1725 = vmatprep.subr.mxu0 0.0
    %1726 = vmatpush1.msra.mxu0 0.0
    %1727 = vmatprep.subr.mxu0 0.0
    %1728 = vmatpush1.msra.mxu0 0.0
    %1729 = vmatprep.subr.mxu0 0.0
    %1730 = vmatpush1.msra.mxu0 0.0
    %1731 = vmatprep.subr.mxu0 0.0
    %1732 = vmatpush1.msra.mxu0 0.0
    %1733 = vmatprep.subr.mxu0 0.0
    %1734 = vmatpush1.msra.mxu0 0.0
    %1735 = vmatprep.subr.mxu0 0.0
    %1736 = vmatpush1.msra.mxu0 0.0
    %1737 = vmatprep.subr.mxu0 0.0
    %1738 = vmatpush1.msra.mxu0 0.0
    %1739 = vmatprep.subr.mxu0 0.0
    %1740 = vmatpush1.msra.mxu0 0.0
    %1741 = vmatprep.subr.mxu0 0.0
    %1742 = vmatpush1.msra.mxu0 0.0
    %1743 = vmatprep.subr.mxu0 0.0
    %1744 = vmatpush1.msra.mxu0 0.0
    %1745 = vmatprep.subr.mxu0 0.0
    %1746 = vmatpush1.msra.mxu0 0.0
    %1747 = vmatprep.subr.mxu0 0.0
    %1748 = vmatpush1.msra.mxu0 0.0
    %1749 = vmatprep.subr.mxu0 0.0
    %1750 = vmatpush1.msra.mxu0 0.0
    %1751 = vmatprep.subr.mxu0 0.0
    %1752 = vmatpush1.msra.mxu0 %v1716
    %1753 = vmatprep.subr.mxu0 0.0
    %1754 = vmatpush2.msra.mxu0 0.0
    %1755 = vmatprep.subr.mxu0 0.0
    %1756 = vmatpush2.msra.mxu0 0.0
    %1757 = vmatprep.subr.mxu0 0.0
    %1758 = vmatpush2.msra.mxu0 0.0
    %1759 = vmatprep.subr.mxu0 0.0
    %1760 = vmatpush2.msra.mxu0 0.0
    %1761 = vmatprep.subr.mxu0 0.0
    %1762 = vmatpush2.msra.mxu0 0.0
    %1763 = vmatprep.subr.mxu0 0.0
    %1764 = vmatpush2.msra.mxu0 0.0
    %1765 = vmatprep.subr.mxu0 0.0
    %1766 = vmatpush2.msra.mxu0 0.0
    %1767 = vmatprep.subr.mxu0 0.0
    %1768 = vmatpush2.msra.mxu0 0.0
    %1769 = vmatprep.subr.mxu0 0.0
    %1770 = vmatpush2.msra.mxu0 0.0
    %1771 = vmatprep.subr.mxu0 0.0
    %1772 = vmatpush2.msra.mxu0 0.0
    %1773 = vmatprep.subr.mxu0 0.0
    %1774 = vmatpush2.msra.mxu0 0.0
    %1775 = vmatprep.subr.mxu0 0.0
    %1776 = vmatpush2.msra.mxu0 0.0
    %1777 = vmatprep.subr.mxu0 0.0
    %1778 = vmatpush2.msra.mxu0 0.0
    %1779 = vmatprep.subr.mxu0 0.0
    %1780 = vmatpush2.msra.mxu0 0.0
    %1781 = vmatprep.subr.mxu0 0.0
    %1782 = vmatpush2.msra.mxu0 0.0
    %1783 = vmatprep.subr.mxu0 0.0
    %1784 = vmatpush2.msra.mxu0 0.0
    %1785 = vmatprep.mubr.f32.mxu0 0.0
    %1786 = vmatmul.mubr.f32.gmra.mxu0 %v1719
    %v1787 = vpop.f32.mrf.mxu0
    %v1788 = vadd.f32 0.0, %v1787
    %v1789 = vpop.f32.mrf.mxu0
    %1790 = vdwg.mxu0
    %1791 = vrot.lane.b32.xlu0 %v562, 112
    %v1792 = vpop.permute.xlu0 %1791
    %v1795 = vsel %vm709, %v1408, 0
    %1797 = vmatprep.subr.mxu0 0.0
    %1798 = vmatpush1.msra.mxu0 0.0
    %1799 = vmatprep.subr.mxu0 0.0
    %1800 = vmatpush1.msra.mxu0 0.0
    %1801 = vmatprep.subr.mxu0 0.0
    %1802 = vmatpush1.msra.mxu0 0.0
    %1803 = vmatprep.subr.mxu0 0.0
    %1804 = vmatpush1.msra.mxu0 0.0
    %1805 = vmatprep.subr.mxu0 0.0
    %1806 = vmatpush1.msra.mxu0 0.0
    %1807 = vmatprep.subr.mxu0 0.0
    %1808 = vmatpush1.msra.mxu0 0.0
    %1809 = vmatprep.subr.mxu0 0.0
    %1810 = vmatpush1.msra.mxu0 0.0
    %1811 = vmatprep.subr.mxu0 0.0
    %1812 = vmatpush1.msra.mxu0 0.0
    %1813 = vmatprep.subr.mxu0 0.0
    %1814 = vmatpush1.msra.mxu0 0.0
    %1815 = vmatprep.subr.mxu0 0.0
    %1816 = vmatpush1.msra.mxu0 0.0
    %1817 = vmatprep.subr.mxu0 0.0
    %1818 = vmatpush1.msra.mxu0 0.0
    %1819 = vmatprep.subr.mxu0 0.0
    %1820 = vmatpush1.msra.mxu0 0.0
    %1821 = vmatprep.subr.mxu0 0.0
    %1822 = vmatpush1.msra.mxu0 0.0
    %1823 = vmatprep.subr.mxu0 0.0
    %1824 = vmatpush1.msra.mxu0 0.0
    %1825 = vmatprep.subr.mxu0 0.0
    %1826 = vmatpush1.msra.mxu0 0.0
    %1827 = vmatprep.subr.mxu0 0.0
    %1828 = vmatpush1.msra.mxu0 %v1792
    %1829 = vmatprep.subr.mxu0 0.0
    %1830 = vmatpush2.msra.mxu0 0.0
    %1831 = vmatprep.subr.mxu0 0.0
    %1832 = vmatpush2.msra.mxu0 0.0
    %1833 = vmatprep.subr.mxu0 0.0
    %1834 = vmatpush2.msra.mxu0 0.0
    %1835 = vmatprep.subr.mxu0 0.0
    %1836 = vmatpush2.msra.mxu0 0.0
    %1837 = vmatprep.subr.mxu0 0.0
    %1838 = vmatpush2.msra.mxu0 0.0
    %1839 = vmatprep.subr.mxu0 0.0
    %1840 = vmatpush2.msra.mxu0 0.0
    %1841 = vmatprep.subr.mxu0 0.0
    %1842 = vmatpush2.msra.mxu0 0.0
    %1843 = vmatprep.subr.mxu0 0.0
    %1844 = vmatpush2.msra.mxu0 0.0
    %1845 = vmatprep.subr.mxu0 0.0
    %1846 = vmatpush2.msra.mxu0 0.0
    %1847 = vmatprep.subr.mxu0 0.0
    %1848 = vmatpush2.msra.mxu0 0.0
    %1849 = vmatprep.subr.mxu0 0.0
    %1850 = vmatpush2.msra.mxu0 0.0
    %1851 = vmatprep.subr.mxu0 0.0
    %1852 = vmatpush2.msra.mxu0 0.0
    %1853 = vmatprep.subr.mxu0 0.0
    %1854 = vmatpush2.msra.mxu0 0.0
    %1855 = vmatprep.subr.mxu0 0.0
    %1856 = vmatpush2.msra.mxu0 0.0
    %1857 = vmatprep.subr.mxu0 0.0
    %1858 = vmatpush2.msra.mxu0 0.0
    %1859 = vmatprep.subr.mxu0 0.0
    %1860 = vmatpush2.msra.mxu0 0.0
    %1861 = vmatprep.mubr.f32.mxu0 0.0
    %1862 = vmatmul.mubr.f32.gmra.mxu0 %v1795
    %v1863 = vpop.f32.mrf.mxu0
    %v1864 = vadd.f32 0.0, %v1863
    %v1865 = vpop.f32.mrf.mxu0
    %1866 = vdwg.mxu0
    %1867 = vrot.lane.b32.xlu0 %v632, 112
    %v1868 = vpop.permute.xlu0 %1867
    %v1871 = vsel %vm709, %v1409, 0
    %1873 = vmatprep.subr.mxu0 0.0
    %1874 = vmatpush1.msra.mxu0 0.0
    %1875 = vmatprep.subr.mxu0 0.0
    %1876 = vmatpush1.msra.mxu0 0.0
    %1877 = vmatprep.subr.mxu0 0.0
    %1878 = vmatpush1.msra.mxu0 0.0
    %1879 = vmatprep.subr.mxu0 0.0
    %1880 = vmatpush1.msra.mxu0 0.0
    %1881 = vmatprep.subr.mxu0 0.0
    %1882 = vmatpush1.msra.mxu0 0.0
    %1883 = vmatprep.subr.mxu0 0.0
    %1884 = vmatpush1.msra.mxu0 0.0
    %1885 = vmatprep.subr.mxu0 0.0
    %1886 = vmatpush1.msra.mxu0 0.0
    %1887 = vmatprep.subr.mxu0 0.0
    %1888 = vmatpush1.msra.mxu0 0.0
    %1889 = vmatprep.subr.mxu0 0.0
    %1890 = vmatpush1.msra.mxu0 0.0
    %1891 = vmatprep.subr.mxu0 0.0
    %1892 = vmatpush1.msra.mxu0 0.0
    %1893 = vmatprep.subr.mxu0 0.0
    %1894 = vmatpush1.msra.mxu0 0.0
    %1895 = vmatprep.subr.mxu0 0.0
    %1896 = vmatpush1.msra.mxu0 0.0
    %1897 = vmatprep.subr.mxu0 0.0
    %1898 = vmatpush1.msra.mxu0 0.0
    %1899 = vmatprep.subr.mxu0 0.0
    %1900 = vmatpush1.msra.mxu0 0.0
    %1901 = vmatprep.subr.mxu0 0.0
    %1902 = vmatpush1.msra.mxu0 0.0
    %1903 = vmatprep.subr.mxu0 0.0
    %1904 = vmatpush1.msra.mxu0 %v1868
    %1905 = vmatprep.subr.mxu0 0.0
    %1906 = vmatpush2.msra.mxu0 0.0
    %1907 = vmatprep.subr.mxu0 0.0
    %1908 = vmatpush2.msra.mxu0 0.0
    %1909 = vmatprep.subr.mxu0 0.0
    %1910 = vmatpush2.msra.mxu0 0.0
    %1911 = vmatprep.subr.mxu0 0.0
    %1912 = vmatpush2.msra.mxu0 0.0
    %1913 = vmatprep.subr.mxu0 0.0
    %1914 = vmatpush2.msra.mxu0 0.0
    %1915 = vmatprep.subr.mxu0 0.0
    %1916 = vmatpush2.msra.mxu0 0.0
    %1917 = vmatprep.subr.mxu0 0.0
    %1918 = vmatpush2.msra.mxu0 0.0
    %1919 = vmatprep.subr.mxu0 0.0
    %1920 = vmatpush2.msra.mxu0 0.0
    %1921 = vmatprep.subr.mxu0 0.0
    %1922 = vmatpush2.msra.mxu0 0.0
    %1923 = vmatprep.subr.mxu0 0.0
    %1924 = vmatpush2.msra.mxu0 0.0
    %1925 = vmatprep.subr.mxu0 0.0
    %1926 = vmatpush2.msra.mxu0 0.0
    %1927 = vmatprep.subr.mxu0 0.0
    %1928 = vmatpush2.msra.mxu0 0.0
    %1929 = vmatprep.subr.mxu0 0.0
    %1930 = vmatpush2.msra.mxu0 0.0
    %1931 = vmatprep.subr.mxu0 0.0
    %1932 = vmatpush2.msra.mxu0 0.0
    %1933 = vmatprep.subr.mxu0 0.0
    %1934 = vmatpush2.msra.mxu0 0.0
    %1935 = vmatprep.subr.mxu0 0.0
    %1936 = vmatpush2.msra.mxu0 0.0
    %1937 = vmatprep.mubr.f32.mxu0 0.0
    %1938 = vmatmul.mubr.f32.gmra.mxu0 %v1871
    %v1939 = vpop.f32.mrf.mxu0
    %v1940 = vadd.f32 0.0, %v1939
    %v1941 = vpop.f32.mrf.mxu0
    %1942 = vdwg.mxu0
    %1943 = vrot.lane.b32.xlu0 %v702, 112
    %v1944 = vpop.permute.xlu0 %1943
    %v1947 = vsel %vm709, %v1410, 0
    %1949 = vmatprep.subr.mxu0 0.0
    %1950 = vmatpush1.msra.mxu0 0.0
    %1951 = vmatprep.subr.mxu0 0.0
    %1952 = vmatpush1.msra.mxu0 0.0
    %1953 = vmatprep.subr.mxu0 0.0
    %1954 = vmatpush1.msra.mxu0 0.0
    %1955 = vmatprep.subr.mxu0 0.0
    %1956 = vmatpush1.msra.mxu0 0.0
    %1957 = vmatprep.subr.mxu0 0.0
    %1958 = vmatpush1.msra.mxu0 0.0
    %1959 = vmatprep.subr.mxu0 0.0
    %1960 = vmatpush1.msra.mxu0 0.0
    %1961 = vmatprep.subr.mxu0 0.0
    %1962 = vmatpush1.msra.mxu0 0.0
    %1963 = vmatprep.subr.mxu0 0.0
    %1964 = vmatpush1.msra.mxu0 0.0
    %1965 = vmatprep.subr.mxu0 0.0
    %1966 = vmatpush1.msra.mxu0 0.0
    %1967 = vmatprep.subr.mxu0 0.0
    %1968 = vmatpush1.msra.mxu0 0.0
    %1969 = vmatprep.subr.mxu0 0.0
    %1970 = vmatpush1.msra.mxu0 0.0
    %1971 = vmatprep.subr.mxu0 0.0
    %1972 = vmatpush1.msra.mxu0 0.0
    %1973 = vmatprep.subr.mxu0 0.0
    %1974 = vmatpush1.msra.mxu0 0.0
    %1975 = vmatprep.subr.mxu0 0.0
    %1976 = vmatpush1.msra.mxu0 0.0
    %1977 = vmatprep.subr.mxu0 0.0
    %1978 = vmatpush1.msra.mxu0 0.0
    %1979 = vmatprep.subr.mxu0 0.0
    %1980 = vmatpush1.msra.mxu0 %v1944
    %1981 = vmatprep.subr.mxu0 0.0
    %1982 = vmatpush2.msra.mxu0 0.0
    %1983 = vmatprep.subr.mxu0 0.0
    %1984 = vmatpush2.msra.mxu0 0.0
    %1985 = vmatprep.subr.mxu0 0.0
    %1986 = vmatpush2.msra.mxu0 0.0
    %1987 = vmatprep.subr.mxu0 0.0
    %1988 = vmatpush2.msra.mxu0 0.0
    %1989 = vmatprep.subr.mxu0 0.0
    %1990 = vmatpush2.msra.mxu0 0.0
    %1991 = vmatprep.subr.mxu0 0.0
    %1992 = vmatpush2.msra.mxu0 0.0
    %1993 = vmatprep.subr.mxu0 0.0
    %1994 = vmatpush2.msra.mxu0 0.0
    %1995 = vmatprep.subr.mxu0 0.0
    %1996 = vmatpush2.msra.mxu0 0.0
    %1997 = vmatprep.subr.mxu0 0.0
    %1998 = vmatpush2.msra.mxu0 0.0
    %1999 = vmatprep.subr.mxu0 0.0
    %2000 = vmatpush2.msra.mxu0 0.0
    %2001 = vmatprep.subr.mxu0 0.0
    %2002 = vmatpush2.msra.mxu0 0.0
    %2003 = vmatprep.subr.mxu0 0.0
    %2004 = vmatpush2.msra.mxu0 0.0
    %2005 = vmatprep.subr.mxu0 0.0
    %2006 = vmatpush2.msra.mxu0 0.0
    %2007 = vmatprep.subr.mxu0 0.0
    %2008 = vmatpush2.msra.mxu0 0.0
    %2009 = vmatprep.subr.mxu0 0.0
    %2010 = vmatpush2.msra.mxu0 0.0
    %2011 = vmatprep.subr.mxu0 0.0
    %2012 = vmatpush2.msra.mxu0 0.0
    %2013 = vmatprep.mubr.f32.mxu0 0.0
    %2014 = vmatmul.mubr.f32.gmra.mxu0 %v1947
    %v2015 = vpop.f32.mrf.mxu0
    %v2016 = vadd.f32 0.0, %v2015
    %v2017 = vpop.f32.mrf.mxu0
    %2018 = vdwg.mxu0
    %v2019 = vld [vmem:[%s4] sm:$0xff]
    %v2020 = vld [vmem:[%s4 + $0x8] sm:$0xff]
    %v2021 = vld [vmem:[%s4 + $0x10] sm:$0xff]
    %v2022 = vld [vmem:[%s4 + $0x18] sm:$0xff]
    %v2023 = vld [vmem:[%s4 + $0x20] sm:$0xff]
    %v2024 = vld [vmem:[%s4 + $0x28] sm:$0xff]
    %v2025 = vld [vmem:[%s4 + $0x30] sm:$0xff]
    %v2026 = vld [vmem:[%s4 + $0x38] sm:$0xff]
    %v2028 = vsel %vm709, %v1484, 0
    %2030 = vmatprep.subr.mxu0 0.0
    %2031 = vmatpush1.msra.mxu0 0.0
    %2032 = vmatprep.subr.mxu0 0.0
    %2033 = vmatpush1.msra.mxu0 0.0
    %2034 = vmatprep.subr.mxu0 0.0
    %2035 = vmatpush1.msra.mxu0 0.0
    %2036 = vmatprep.subr.mxu0 0.0
    %2037 = vmatpush1.msra.mxu0 0.0
    %2038 = vmatprep.subr.mxu0 0.0
    %2039 = vmatpush1.msra.mxu0 0.0
    %2040 = vmatprep.subr.mxu0 0.0
    %2041 = vmatpush1.msra.mxu0 0.0
    %2042 = vmatprep.subr.mxu0 0.0
    %2043 = vmatpush1.msra.mxu0 0.0
    %2044 = vmatprep.subr.mxu0 0.0
    %2045 = vmatpush1.msra.mxu0 0.0
    %2046 = vmatprep.subr.mxu0 0.0
    %2047 = vmatpush1.msra.mxu0 0.0
    %2048 = vmatprep.subr.mxu0 0.0
    %2049 = vmatpush1.msra.mxu0 0.0
    %2050 = vmatprep.subr.mxu0 0.0
    %2051 = vmatpush1.msra.mxu0 0.0
    %2052 = vmatprep.subr.mxu0 0.0
    %2053 = vmatpush1.msra.mxu0 0.0
    %2054 = vmatprep.subr.mxu0 0.0
    %2055 = vmatpush1.msra.mxu0 0.0
    %2056 = vmatprep.subr.mxu0 0.0
    %2057 = vmatpush1.msra.mxu0 0.0
    %2058 = vmatprep.subr.mxu0 0.0
    %2059 = vmatpush1.msra.mxu0 0.0
    %2060 = vmatprep.subr.mxu0 0.0
    %2061 = vmatpush1.msra.mxu0 %v2019
    %2062 = vmatprep.subr.mxu0 0.0
    %2063 = vmatpush2.msra.mxu0 0.0
    %2064 = vmatprep.subr.mxu0 0.0
    %2065 = vmatpush2.msra.mxu0 0.0
    %2066 = vmatprep.subr.mxu0 0.0
    %2067 = vmatpush2.msra.mxu0 0.0
    %2068 = vmatprep.subr.mxu0 0.0
    %2069 = vmatpush2.msra.mxu0 0.0
    %2070 = vmatprep.subr.mxu0 0.0
    %2071 = vmatpush2.msra.mxu0 0.0
    %2072 = vmatprep.subr.mxu0 0.0
    %2073 = vmatpush2.msra.mxu0 0.0
    %2074 = vmatprep.subr.mxu0 0.0
    %2075 = vmatpush2.msra.mxu0 0.0
    %2076 = vmatprep.subr.mxu0 0.0
    %2077 = vmatpush2.msra.mxu0 0.0
    %2078 = vmatprep.subr.mxu0 0.0
    %2079 = vmatpush2.msra.mxu0 0.0
    %2080 = vmatprep.subr.mxu0 0.0
    %2081 = vmatpush2.msra.mxu0 0.0
    %2082 = vmatprep.subr.mxu0 0.0
    %2083 = vmatpush2.msra.mxu0 0.0
    %2084 = vmatprep.subr.mxu0 0.0
    %2085 = vmatpush2.msra.mxu0 0.0
    %2086 = vmatprep.subr.mxu0 0.0
    %2087 = vmatpush2.msra.mxu0 0.0
    %2088 = vmatprep.subr.mxu0 0.0
    %2089 = vmatpush2.msra.mxu0 0.0
    %2090 = vmatprep.subr.mxu0 0.0
    %2091 = vmatpush2.msra.mxu0 0.0
    %2092 = vmatprep.subr.mxu0 0.0
    %2093 = vmatpush2.msra.mxu0 0.0
    %2094 = vmatprep.mubr.f32.mxu0 0.0
    %2095 = vmatmul.mubr.f32.gmra.mxu0 %v2028
    %v2096 = vpop.f32.mrf.mxu0
    %v2097 = vadd.f32 0.0, %v2096
    %v2098 = vpop.f32.mrf.mxu0
    %2099 = vdwg.mxu0
    %v2101 = vsel %vm709, %v1560, 0
    %2103 = vmatprep.subr.mxu0 0.0
    %2104 = vmatpush1.msra.mxu0 0.0
    %2105 = vmatprep.subr.mxu0 0.0
    %2106 = vmatpush1.msra.mxu0 0.0
    %2107 = vmatprep.subr.mxu0 0.0
    %2108 = vmatpush1.msra.mxu0 0.0
    %2109 = vmatprep.subr.mxu0 0.0
    %2110 = vmatpush1.msra.mxu0 0.0
    %2111 = vmatprep.subr.mxu0 0.0
    %2112 = vmatpush1.msra.mxu0 0.0
    %2113 = vmatprep.subr.mxu0 0.0
    %2114 = vmatpush1.msra.mxu0 0.0
    %2115 = vmatprep.subr.mxu0 0.0
    %2116 = vmatpush1.msra.mxu0 0.0
    %2117 = vmatprep.subr.mxu0 0.0
    %2118 = vmatpush1.msra.mxu0 0.0
    %2119 = vmatprep.subr.mxu0 0.0
    %2120 = vmatpush1.msra.mxu0 0.0
    %2121 = vmatprep.subr.mxu0 0.0
    %2122 = vmatpush1.msra.mxu0 0.0
    %2123 = vmatprep.subr.mxu0 0.0
    %2124 = vmatpush1.msra.mxu0 0.0
    %2125 = vmatprep.subr.mxu0 0.0
    %2126 = vmatpush1.msra.mxu0 0.0
    %2127 = vmatprep.subr.mxu0 0.0
    %2128 = vmatpush1.msra.mxu0 0.0
    %2129 = vmatprep.subr.mxu0 0.0
    %2130 = vmatpush1.msra.mxu0 0.0
    %2131 = vmatprep.subr.mxu0 0.0
    %2132 = vmatpush1.msra.mxu0 0.0
    %2133 = vmatprep.subr.mxu0 0.0
    %2134 = vmatpush1.msra.mxu0 %v2020
    %2135 = vmatprep.subr.mxu0 0.0
    %2136 = vmatpush2.msra.mxu0 0.0
    %2137 = vmatprep.subr.mxu0 0.0
    %2138 = vmatpush2.msra.mxu0 0.0
    %2139 = vmatprep.subr.mxu0 0.0
    %2140 = vmatpush2.msra.mxu0 0.0
    %2141 = vmatprep.subr.mxu0 0.0
    %2142 = vmatpush2.msra.mxu0 0.0
    %2143 = vmatprep.subr.mxu0 0.0
    %2144 = vmatpush2.msra.mxu0 0.0
    %2145 = vmatprep.subr.mxu0 0.0
    %2146 = vmatpush2.msra.mxu0 0.0
    %2147 = vmatprep.subr.mxu0 0.0
    %2148 = vmatpush2.msra.mxu0 0.0
    %2149 = vmatprep.subr.mxu0 0.0
    %2150 = vmatpush2.msra.mxu0 0.0
    %2151 = vmatprep.subr.mxu0 0.0
    %2152 = vmatpush2.msra.mxu0 0.0
    %2153 = vmatprep.subr.mxu0 0.0
    %2154 = vmatpush2.msra.mxu0 0.0
    %2155 = vmatprep.subr.mxu0 0.0
    %2156 = vmatpush2.msra.mxu0 0.0
    %2157 = vmatprep.subr.mxu0 0.0
    %2158 = vmatpush2.msra.mxu0 0.0
    %2159 = vmatprep.subr.mxu0 0.0
    %2160 = vmatpush2.msra.mxu0 0.0
    %2161 = vmatprep.subr.mxu0 0.0
    %2162 = vmatpush2.msra.mxu0 0.0
    %2163 = vmatprep.subr.mxu0 0.0
    %2164 = vmatpush2.msra.mxu0 0.0
    %2165 = vmatprep.subr.mxu0 0.0
    %2166 = vmatpush2.msra.mxu0 0.0
    %2167 = vmatprep.mubr.f32.mxu0 0.0
    %2168 = vmatmul.mubr.f32.gmra.mxu0 %v2101
    %v2169 = vpop.f32.mrf.mxu0
    %v2170 = vadd.f32 0.0, %v2169
    %v2171 = vpop.f32.mrf.mxu0
    %2172 = vdwg.mxu0
    %v2174 = vsel %vm709, %v1636, 0
    %2176 = vmatprep.subr.mxu0 0.0
    %2177 = vmatpush1.msra.mxu0 0.0
    %2178 = vmatprep.subr.mxu0 0.0
    %2179 = vmatpush1.msra.mxu0 0.0
    %2180 = vmatprep.subr.mxu0 0.0
    %2181 = vmatpush1.msra.mxu0 0.0
    %2182 = vmatprep.subr.mxu0 0.0
    %2183 = vmatpush1.msra.mxu0 0.0
    %2184 = vmatprep.subr.mxu0 0.0
    %2185 = vmatpush1.msra.mxu0 0.0
    %2186 = vmatprep.subr.mxu0 0.0
    %2187 = vmatpush1.msra.mxu0 0.0
    %2188 = vmatprep.subr.mxu0 0.0
    %2189 = vmatpush1.msra.mxu0 0.0
    %2190 = vmatprep.subr.mxu0 0.0
    %2191 = vmatpush1.msra.mxu0 0.0
    %2192 = vmatprep.subr.mxu0 0.0
    %2193 = vmatpush1.msra.mxu0 0.0
    %2194 = vmatprep.subr.mxu0 0.0
    %2195 = vmatpush1.msra.mxu0 0.0
    %2196 = vmatprep.subr.mxu0 0.0
    %2197 = vmatpush1.msra.mxu0 0.0
    %2198 = vmatprep.subr.mxu0 0.0
    %2199 = vmatpush1.msra.mxu0 0.0
    %2200 = vmatprep.subr.mxu0 0.0
    %2201 = vmatpush1.msra.mxu0 0.0
    %2202 = vmatprep.subr.mxu0 0.0
    %2203 = vmatpush1.msra.mxu0 0.0
    %2204 = vmatprep.subr.mxu0 0.0
    %2205 = vmatpush1.msra.mxu0 0.0
    %2206 = vmatprep.subr.mxu0 0.0
    %2207 = vmatpush1.msra.mxu0 %v2021
    %2208 = vmatprep.subr.mxu0 0.0
    %2209 = vmatpush2.msra.mxu0 0.0
    %2210 = vmatprep.subr.mxu0 0.0
    %2211 = vmatpush2.msra.mxu0 0.0
    %2212 = vmatprep.subr.mxu0 0.0
    %2213 = vmatpush2.msra.mxu0 0.0
    %2214 = vmatprep.subr.mxu0 0.0
    %2215 = vmatpush2.msra.mxu0 0.0
    %2216 = vmatprep.subr.mxu0 0.0
    %2217 = vmatpush2.msra.mxu0 0.0
    %2218 = vmatprep.subr.mxu0 0.0
    %2219 = vmatpush2.msra.mxu0 0.0
    %2220 = vmatprep.subr.mxu0 0.0
    %2221 = vmatpush2.msra.mxu0 0.0
    %2222 = vmatprep.subr.mxu0 0.0
    %2223 = vmatpush2.msra.mxu0 0.0
    %2224 = vmatprep.subr.mxu0 0.0
    %2225 = vmatpush2.msra.mxu0 0.0
    %2226 = vmatprep.subr.mxu0 0.0
    %2227 = vmatpush2.msra.mxu0 0.0
    %2228 = vmatprep.subr.mxu0 0.0
    %2229 = vmatpush2.msra.mxu0 0.0
    %2230 = vmatprep.subr.mxu0 0.0
    %2231 = vmatpush2.msra.mxu0 0.0
    %2232 = vmatprep.subr.mxu0 0.0
    %2233 = vmatpush2.msra.mxu0 0.0
    %2234 = vmatprep.subr.mxu0 0.0
    %2235 = vmatpush2.msra.mxu0 0.0
    %2236 = vmatprep.subr.mxu0 0.0
    %2237 = vmatpush2.msra.mxu0 0.0
    %2238 = vmatprep.subr.mxu0 0.0
    %2239 = vmatpush2.msra.mxu0 0.0
    %2240 = vmatprep.mubr.f32.mxu0 0.0
    %2241 = vmatmul.mubr.f32.gmra.mxu0 %v2174
    %v2242 = vpop.f32.mrf.mxu0
    %v2243 = vadd.f32 0.0, %v2242
    %v2244 = vpop.f32.mrf.mxu0
    %2245 = vdwg.mxu0
    %v2247 = vsel %vm709, %v1712, 0
    %2249 = vmatprep.subr.mxu0 0.0
    %2250 = vmatpush1.msra.mxu0 0.0
    %2251 = vmatprep.subr.mxu0 0.0
    %2252 = vmatpush1.msra.mxu0 0.0
    %2253 = vmatprep.subr.mxu0 0.0
    %2254 = vmatpush1.msra.mxu0 0.0
    %2255 = vmatprep.subr.mxu0 0.0
    %2256 = vmatpush1.msra.mxu0 0.0
    %2257 = vmatprep.subr.mxu0 0.0
    %2258 = vmatpush1.msra.mxu0 0.0
    %2259 = vmatprep.subr.mxu0 0.0
    %2260 = vmatpush1.msra.mxu0 0.0
    %2261 = vmatprep.subr.mxu0 0.0
    %2262 = vmatpush1.msra.mxu0 0.0
    %2263 = vmatprep.subr.mxu0 0.0
    %2264 = vmatpush1.msra.mxu0 0.0
    %2265 = vmatprep.subr.mxu0 0.0
    %2266 = vmatpush1.msra.mxu0 0.0
    %2267 = vmatprep.subr.mxu0 0.0
    %2268 = vmatpush1.msra.mxu0 0.0
    %2269 = vmatprep.subr.mxu0 0.0
    %2270 = vmatpush1.msra.mxu0 0.0
    %2271 = vmatprep.subr.mxu0 0.0
    %2272 = vmatpush1.msra.mxu0 0.0
    %2273 = vmatprep.subr.mxu0 0.0
    %2274 = vmatpush1.msra.mxu0 0.0
    %2275 = vmatprep.subr.mxu0 0.0
    %2276 = vmatpush1.msra.mxu0 0.0
    %2277 = vmatprep.subr.mxu0 0.0
    %2278 = vmatpush1.msra.mxu0 0.0
    %2279 = vmatprep.subr.mxu0 0.0
    %2280 = vmatpush1.msra.mxu0 %v2022
    %2281 = vmatprep.subr.mxu0 0.0
    %2282 = vmatpush2.msra.mxu0 0.0
    %2283 = vmatprep.subr.mxu0 0.0
    %2284 = vmatpush2.msra.mxu0 0.0
    %2285 = vmatprep.subr.mxu0 0.0
    %2286 = vmatpush2.msra.mxu0 0.0
    %2287 = vmatprep.subr.mxu0 0.0
    %2288 = vmatpush2.msra.mxu0 0.0
    %2289 = vmatprep.subr.mxu0 0.0
    %2290 = vmatpush2.msra.mxu0 0.0
    %2291 = vmatprep.subr.mxu0 0.0
    %2292 = vmatpush2.msra.mxu0 0.0
    %2293 = vmatprep.subr.mxu0 0.0
    %2294 = vmatpush2.msra.mxu0 0.0
    %2295 = vmatprep.subr.mxu0 0.0
    %2296 = vmatpush2.msra.mxu0 0.0
    %2297 = vmatprep.subr.mxu0 0.0
    %2298 = vmatpush2.msra.mxu0 0.0
    %2299 = vmatprep.subr.mxu0 0.0
    %2300 = vmatpush2.msra.mxu0 0.0
    %2301 = vmatprep.subr.mxu0 0.0
    %2302 = vmatpush2.msra.mxu0 0.0
    %2303 = vmatprep.subr.mxu0 0.0
    %2304 = vmatpush2.msra.mxu0 0.0
    %2305 = vmatprep.subr.mxu0 0.0
    %2306 = vmatpush2.msra.mxu0 0.0
    %2307 = vmatprep.subr.mxu0 0.0
    %2308 = vmatpush2.msra.mxu0 0.0
    %2309 = vmatprep.subr.mxu0 0.0
    %2310 = vmatpush2.msra.mxu0 0.0
    %2311 = vmatprep.subr.mxu0 0.0
    %2312 = vmatpush2.msra.mxu0 0.0
    %2313 = vmatprep.mubr.f32.mxu0 0.0
    %2314 = vmatmul.mubr.f32.gmra.mxu0 %v2247
    %v2315 = vpop.f32.mrf.mxu0
    %v2316 = vadd.f32 0.0, %v2315
    %v2317 = vpop.f32.mrf.mxu0
    %2318 = vdwg.mxu0
    %v2320 = vsel %vm709, %v1788, 0
    %2322 = vmatprep.subr.mxu0 0.0
    %2323 = vmatpush1.msra.mxu0 0.0
    %2324 = vmatprep.subr.mxu0 0.0
    %2325 = vmatpush1.msra.mxu0 0.0
    %2326 = vmatprep.subr.mxu0 0.0
    %2327 = vmatpush1.msra.mxu0 0.0
    %2328 = vmatprep.subr.mxu0 0.0
    %2329 = vmatpush1.msra.mxu0 0.0
    %2330 = vmatprep.subr.mxu0 0.0
    %2331 = vmatpush1.msra.mxu0 0.0
    %2332 = vmatprep.subr.mxu0 0.0
    %2333 = vmatpush1.msra.mxu0 0.0
    %2334 = vmatprep.subr.mxu0 0.0
    %2335 = vmatpush1.msra.mxu0 0.0
    %2336 = vmatprep.subr.mxu0 0.0
    %2337 = vmatpush1.msra.mxu0 0.0
    %2338 = vmatprep.subr.mxu0 0.0
    %2339 = vmatpush1.msra.mxu0 0.0
    %2340 = vmatprep.subr.mxu0 0.0
    %2341 = vmatpush1.msra.mxu0 0.0
    %2342 = vmatprep.subr.mxu0 0.0
    %2343 = vmatpush1.msra.mxu0 0.0
    %2344 = vmatprep.subr.mxu0 0.0
    %2345 = vmatpush1.msra.mxu0 0.0
    %2346 = vmatprep.subr.mxu0 0.0
    %2347 = vmatpush1.msra.mxu0 0.0
    %2348 = vmatprep.subr.mxu0 0.0
    %2349 = vmatpush1.msra.mxu0 0.0
    %2350 = vmatprep.subr.mxu0 0.0
    %2351 = vmatpush1.msra.mxu0 0.0
    %2352 = vmatprep.subr.mxu0 0.0
    %2353 = vmatpush1.msra.mxu0 %v2023
    %2354 = vmatprep.subr.mxu0 0.0
    %2355 = vmatpush2.msra.mxu0 0.0
    %2356 = vmatprep.subr.mxu0 0.0
    %2357 = vmatpush2.msra.mxu0 0.0
    %2358 = vmatprep.subr.mxu0 0.0
    %2359 = vmatpush2.msra.mxu0 0.0
    %2360 = vmatprep.subr.mxu0 0.0
    %2361 = vmatpush2.msra.mxu0 0.0
    %2362 = vmatprep.subr.mxu0 0.0
    %2363 = vmatpush2.msra.mxu0 0.0
    %2364 = vmatprep.subr.mxu0 0.0
    %2365 = vmatpush2.msra.mxu0 0.0
    %2366 = vmatprep.subr.mxu0 0.0
    %2367 = vmatpush2.msra.mxu0 0.0
    %2368 = vmatprep.subr.mxu0 0.0
    %2369 = vmatpush2.msra.mxu0 0.0
    %2370 = vmatprep.subr.mxu0 0.0
    %2371 = vmatpush2.msra.mxu0 0.0
    %2372 = vmatprep.subr.mxu0 0.0
    %2373 = vmatpush2.msra.mxu0 0.0
    %2374 = vmatprep.subr.mxu0 0.0
    %2375 = vmatpush2.msra.mxu0 0.0
    %2376 = vmatprep.subr.mxu0 0.0
    %2377 = vmatpush2.msra.mxu0 0.0
    %2378 = vmatprep.subr.mxu0 0.0
    %2379 = vmatpush2.msra.mxu0 0.0
    %2380 = vmatprep.subr.mxu0 0.0
    %2381 = vmatpush2.msra.mxu0 0.0
    %2382 = vmatprep.subr.mxu0 0.0
    %2383 = vmatpush2.msra.mxu0 0.0
    %2384 = vmatprep.subr.mxu0 0.0
    %2385 = vmatpush2.msra.mxu0 0.0
    %2386 = vmatprep.mubr.f32.mxu0 0.0
    %2387 = vmatmul.mubr.f32.gmra.mxu0 %v2320
    %v2388 = vpop.f32.mrf.mxu0
    %v2389 = vadd.f32 0.0, %v2388
    %v2390 = vpop.f32.mrf.mxu0
    %2391 = vdwg.mxu0
    %v2393 = vsel %vm709, %v1864, 0
    %2395 = vmatprep.subr.mxu0 0.0
    %2396 = vmatpush1.msra.mxu0 0.0
    %2397 = vmatprep.subr.mxu0 0.0
    %2398 = vmatpush1.msra.mxu0 0.0
    %2399 = vmatprep.subr.mxu0 0.0
    %2400 = vmatpush1.msra.mxu0 0.0
    %2401 = vmatprep.subr.mxu0 0.0
    %2402 = vmatpush1.msra.mxu0 0.0
    %2403 = vmatprep.subr.mxu0 0.0
    %2404 = vmatpush1.msra.mxu0 0.0
    %2405 = vmatprep.subr.mxu0 0.0
    %2406 = vmatpush1.msra.mxu0 0.0
    %2407 = vmatprep.subr.mxu0 0.0
    %2408 = vmatpush1.msra.mxu0 0.0
    %2409 = vmatprep.subr.mxu0 0.0
    %2410 = vmatpush1.msra.mxu0 0.0
    %2411 = vmatprep.subr.mxu0 0.0
    %2412 = vmatpush1.msra.mxu0 0.0
    %2413 = vmatprep.subr.mxu0 0.0
    %2414 = vmatpush1.msra.mxu0 0.0
    %2415 = vmatprep.subr.mxu0 0.0
    %2416 = vmatpush1.msra.mxu0 0.0
    %2417 = vmatprep.subr.mxu0 0.0
    %2418 = vmatpush1.msra.mxu0 0.0
    %2419 = vmatprep.subr.mxu0 0.0
    %2420 = vmatpush1.msra.mxu0 0.0
    %2421 = vmatprep.subr.mxu0 0.0
    %2422 = vmatpush1.msra.mxu0 0.0
    %2423 = vmatprep.subr.mxu0 0.0
    %2424 = vmatpush1.msra.mxu0 0.0
    %2425 = vmatprep.subr.mxu0 0.0
    %2426 = vmatpush1.msra.mxu0 %v2024
    %2427 = vmatprep.subr.mxu0 0.0
    %2428 = vmatpush2.msra.mxu0 0.0
    %2429 = vmatprep.subr.mxu0 0.0
    %2430 = vmatpush2.msra.mxu0 0.0
    %2431 = vmatprep.subr.mxu0 0.0
    %2432 = vmatpush2.msra.mxu0 0.0
    %2433 = vmatprep.subr.mxu0 0.0
    %2434 = vmatpush2.msra.mxu0 0.0
    %2435 = vmatprep.subr.mxu0 0.0
    %2436 = vmatpush2.msra.mxu0 0.0
    %2437 = vmatprep.subr.mxu0 0.0
    %2438 = vmatpush2.msra.mxu0 0.0
    %2439 = vmatprep.subr.mxu0 0.0
    %2440 = vmatpush2.msra.mxu0 0.0
    %2441 = vmatprep.subr.mxu0 0.0
    %2442 = vmatpush2.msra.mxu0 0.0
    %2443 = vmatprep.subr.mxu0 0.0
    %2444 = vmatpush2.msra.mxu0 0.0
    %2445 = vmatprep.subr.mxu0 0.0
    %2446 = vmatpush2.msra.mxu0 0.0
    %2447 = vmatprep.subr.mxu0 0.0
    %2448 = vmatpush2.msra.mxu0 0.0
    %2449 = vmatprep.subr.mxu0 0.0
    %2450 = vmatpush2.msra.mxu0 0.0
    %2451 = vmatprep.subr.mxu0 0.0
    %2452 = vmatpush2.msra.mxu0 0.0
    %2453 = vmatprep.subr.mxu0 0.0
    %2454 = vmatpush2.msra.mxu0 0.0
    %2455 = vmatprep.subr.mxu0 0.0
    %2456 = vmatpush2.msra.mxu0 0.0
    %2457 = vmatprep.subr.mxu0 0.0
    %2458 = vmatpush2.msra.mxu0 0.0
    %2459 = vmatprep.mubr.f32.mxu0 0.0
    %2460 = vmatmul.mubr.f32.gmra.mxu0 %v2393
    %v2461 = vpop.f32.mrf.mxu0
    %v2462 = vadd.f32 0.0, %v2461
    %v2463 = vpop.f32.mrf.mxu0
    %2464 = vdwg.mxu0
    %v2466 = vsel %vm709, %v1940, 0
    %2468 = vmatprep.subr.mxu0 0.0
    %2469 = vmatpush1.msra.mxu0 0.0
    %2470 = vmatprep.subr.mxu0 0.0
    %2471 = vmatpush1.msra.mxu0 0.0
    %2472 = vmatprep.subr.mxu0 0.0
    %2473 = vmatpush1.msra.mxu0 0.0
    %2474 = vmatprep.subr.mxu0 0.0
    %2475 = vmatpush1.msra.mxu0 0.0
    %2476 = vmatprep.subr.mxu0 0.0
    %2477 = vmatpush1.msra.mxu0 0.0
    %2478 = vmatprep.subr.mxu0 0.0
    %2479 = vmatpush1.msra.mxu0 0.0
    %2480 = vmatprep.subr.mxu0 0.0
    %2481 = vmatpush1.msra.mxu0 0.0
    %2482 = vmatprep.subr.mxu0 0.0
    %2483 = vmatpush1.msra.mxu0 0.0
    %2484 = vmatprep.subr.mxu0 0.0
    %2485 = vmatpush1.msra.mxu0 0.0
    %2486 = vmatprep.subr.mxu0 0.0
    %2487 = vmatpush1.msra.mxu0 0.0
    %2488 = vmatprep.subr.mxu0 0.0
    %2489 = vmatpush1.msra.mxu0 0.0
    %2490 = vmatprep.subr.mxu0 0.0
    %2491 = vmatpush1.msra.mxu0 0.0
    %2492 = vmatprep.subr.mxu0 0.0
    %2493 = vmatpush1.msra.mxu0 0.0
    %2494 = vmatprep.subr.mxu0 0.0
    %2495 = vmatpush1.msra.mxu0 0.0
    %2496 = vmatprep.subr.mxu0 0.0
    %2497 = vmatpush1.msra.mxu0 0.0
    %2498 = vmatprep.subr.mxu0 0.0
    %2499 = vmatpush1.msra.mxu0 %v2025
    %2500 = vmatprep.subr.mxu0 0.0
    %2501 = vmatpush2.msra.mxu0 0.0
    %2502 = vmatprep.subr.mxu0 0.0
    %2503 = vmatpush2.msra.mxu0 0.0
    %2504 = vmatprep.subr.mxu0 0.0
    %2505 = vmatpush2.msra.mxu0 0.0
    %2506 = vmatprep.subr.mxu0 0.0
    %2507 = vmatpush2.msra.mxu0 0.0
    %2508 = vmatprep.subr.mxu0 0.0
    %2509 = vmatpush2.msra.mxu0 0.0
    %2510 = vmatprep.subr.mxu0 0.0
    %2511 = vmatpush2.msra.mxu0 0.0
    %2512 = vmatprep.subr.mxu0 0.0
    %2513 = vmatpush2.msra.mxu0 0.0
    %2514 = vmatprep.subr.mxu0 0.0
    %2515 = vmatpush2.msra.mxu0 0.0
    %2516 = vmatprep.subr.mxu0 0.0
    %2517 = vmatpush2.msra.mxu0 0.0
    %2518 = vmatprep.subr.mxu0 0.0
    %2519 = vmatpush2.msra.mxu0 0.0
    %2520 = vmatprep.subr.mxu0 0.0
    %2521 = vmatpush2.msra.mxu0 0.0
    %2522 = vmatprep.subr.mxu0 0.0
    %2523 = vmatpush2.msra.mxu0 0.0
    %2524 = vmatprep.subr.mxu0 0.0
    %2525 = vmatpush2.msra.mxu0 0.0
    %2526 = vmatprep.subr.mxu0 0.0
    %2527 = vmatpush2.msra.mxu0 0.0
    %2528 = vmatprep.subr.mxu0 0.0
    %2529 = vmatpush2.msra.mxu0 0.0
    %2530 = vmatprep.subr.mxu0 0.0
    %2531 = vmatpush2.msra.mxu0 0.0
    %2532 = vmatprep.mubr.f32.mxu0 0.0
    %2533 = vmatmul.mubr.f32.gmra.mxu0 %v2466
    %v2534 = vpop.f32.mrf.mxu0
    %v2535 = vadd.f32 0.0, %v2534
    %v2536 = vpop.f32.mrf.mxu0
    %2537 = vdwg.mxu0
    %v2539 = vsel %vm709, %v2016, 0
    %2541 = vmatprep.subr.mxu0 0.0
    %2542 = vmatpush1.msra.mxu0 0.0
    %2543 = vmatprep.subr.mxu0 0.0
    %2544 = vmatpush1.msra.mxu0 0.0
    %2545 = vmatprep.subr.mxu0 0.0
    %2546 = vmatpush1.msra.mxu0 0.0
    %2547 = vmatprep.subr.mxu0 0.0
    %2548 = vmatpush1.msra.mxu0 0.0
    %2549 = vmatprep.subr.mxu0 0.0
    %2550 = vmatpush1.msra.mxu0 0.0
    %2551 = vmatprep.subr.mxu0 0.0
    %2552 = vmatpush1.msra.mxu0 0.0
    %2553 = vmatprep.subr.mxu0 0.0
    %2554 = vmatpush1.msra.mxu0 0.0
    %2555 = vmatprep.subr.mxu0 0.0
    %2556 = vmatpush1.msra.mxu0 0.0
    %2557 = vmatprep.subr.mxu0 0.0
    %2558 = vmatpush1.msra.mxu0 0.0
    %2559 = vmatprep.subr.mxu0 0.0
    %2560 = vmatpush1.msra.mxu0 0.0
    %2561 = vmatprep.subr.mxu0 0.0
    %2562 = vmatpush1.msra.mxu0 0.0
    %2563 = vmatprep.subr.mxu0 0.0
    %2564 = vmatpush1.msra.mxu0 0.0
    %2565 = vmatprep.subr.mxu0 0.0
    %2566 = vmatpush1.msra.mxu0 0.0
    %2567 = vmatprep.subr.mxu0 0.0
    %2568 = vmatpush1.msra.mxu0 0.0
    %2569 = vmatprep.subr.mxu0 0.0
    %2570 = vmatpush1.msra.mxu0 0.0
    %2571 = vmatprep.subr.mxu0 0.0
    %2572 = vmatpush1.msra.mxu0 %v2026
    %2573 = vmatprep.subr.mxu0 0.0
    %2574 = vmatpush2.msra.mxu0 0.0
    %2575 = vmatprep.subr.mxu0 0.0
    %2576 = vmatpush2.msra.mxu0 0.0
    %2577 = vmatprep.subr.mxu0 0.0
    %2578 = vmatpush2.msra.mxu0 0.0
    %2579 = vmatprep.subr.mxu0 0.0
    %2580 = vmatpush2.msra.mxu0 0.0
    %2581 = vmatprep.subr.mxu0 0.0
    %2582 = vmatpush2.msra.mxu0 0.0
    %2583 = vmatprep.subr.mxu0 0.0
    %2584 = vmatpush2.msra.mxu0 0.0
    %2585 = vmatprep.subr.mxu0 0.0
    %2586 = vmatpush2.msra.mxu0 0.0
    %2587 = vmatprep.subr.mxu0 0.0
    %2588 = vmatpush2.msra.mxu0 0.0
    %2589 = vmatprep.subr.mxu0 0.0
    %2590 = vmatpush2.msra.mxu0 0.0
    %2591 = vmatprep.subr.mxu0 0.0
    %2592 = vmatpush2.msra.mxu0 0.0
    %2593 = vmatprep.subr.mxu0 0.0
    %2594 = vmatpush2.msra.mxu0 0.0
    %2595 = vmatprep.subr.mxu0 0.0
    %2596 = vmatpush2.msra.mxu0 0.0
    %2597 = vmatprep.subr.mxu0 0.0
    %2598 = vmatpush2.msra.mxu0 0.0
    %2599 = vmatprep.subr.mxu0 0.0
    %2600 = vmatpush2.msra.mxu0 0.0
    %2601 = vmatprep.subr.mxu0 0.0
    %2602 = vmatpush2.msra.mxu0 0.0
    %2603 = vmatprep.subr.mxu0 0.0
    %2604 = vmatpush2.msra.mxu0 0.0
    %2605 = vmatprep.mubr.f32.mxu0 0.0
    %2606 = vmatmul.mubr.f32.gmra.mxu0 %v2539
    %v2607 = vpop.f32.mrf.mxu0
    %v2608 = vadd.f32 0.0, %v2607
    %v2609 = vpop.f32.mrf.mxu0
    %2610 = vdwg.mxu0
    %v2611 = vadd.f32 %v2097, %v2170
    %v2612 = vadd.f32 %v2389, %v2462
    %v2613 = vadd.f32 %v2611, %v2243
    %v2614 = vadd.f32 %v2612, %v2535
    %v2615 = vadd.f32 %v2613, %v2316
    %v2616 = vadd.f32 %v2614, %v2608
    %v2617 = vld [vmem:[%s5] sm:$0x1]
    %v2619 = vlaneseq
    %v2620 = vshrl.u32 %v2619, 7
    %v2621 = vsub.s32 0, %v2620
    %v2622 = vrot.slane %v2617, %v2621
    %v2624 = vadd.f32 %v2615, %v2622
    %v2625 = vadd.f32 %v2616, %v2622
    %v2626 = vadd.f32 %v48, %v2624
    %v2627 = vadd.f32 %v49, %v2625
    %v2628 = vld [vmem:[%s6] sm:$0x1]
    %v2629 = vld [vmem:[%s7] sm:$0x1]
    %v2630 = vsel %vm138, %v2626, 0.0
    %2631 = vadd.xlane.f32.xlu0 %v2630
    %v2632 = vpop.xlane.xlu0 %2631
    %v2633 = vsel %vm138, %v2627, 0.0
    %2634 = vadd.xlane.f32.xlu0 %v2633
    %v2635 = vpop.xlane.xlu0 %2634
    %v2636 = vrcp.pop 32.0
    %v2637 = vmul.f32 %v2632, %v2636
    %v2638 = vmul.f32 %v2635, %v2636
    %v2639 = vsub.f32 %v2626, %v2637
    %v2640 = vsub.f32 %v2627, %v2638
    %v2641 = vmul.f32 %v2639, %v2639
    %v2642 = vmul.f32 %v2640, %v2640
    %v2643 = vsel %vm138, %v2641, 0.0
    %2644 = vadd.xlane.f32.xlu0 %v2643
    %v2645 = vpop.xlane.xlu0 %2644
    %v2646 = vsel %vm138, %v2642, 0.0
    %2647 = vadd.xlane.f32.xlu0 %v2646
    %v2648 = vpop.xlane.xlu0 %2647
    %v2649 = vmul.f32 %v2645, %v2636
    %v2650 = vmul.f32 %v2648, %v2636
    %v2651 = vadd.f32 %v2649, 1e-05
    %v2652 = vadd.f32 %v2650, 1e-05
    %v2653 = vrsqrt.pop %v2651
    %v2654 = vrsqrt.pop %v2652
    %v2655 = vmul.f32 %v2639, %v2653
    %v2656 = vmul.f32 %v2640, %v2654
    %v2658 = vlaneseq
    %v2659 = vshrl.u32 %v2658, 7
    %v2660 = vsub.s32 0, %v2659
    %v2661 = vrot.slane %v2628, %v2660
    %v2663 = vmul.f32 %v2655, %v2661
    %v2664 = vmul.f32 %v2656, %v2661
    %v2666 = vlaneseq
    %v2667 = vshrl.u32 %v2666, 7
    %v2668 = vsub.s32 0, %v2667
    %v2669 = vrot.slane %v2629, %v2668
    %v2671 = vadd.f32 %v2663, %v2669
    %v2672 = vadd.f32 %v2664, %v2669
    %v2673 = vld [vmem:[%s8] sm:$0xff]
    %v2674 = vld [vmem:[%s8 + $0x8] sm:$0xff]
    %v2675 = vld [vmem:[%s8 + $0x10] sm:$0xff]
    %v2676 = vld [vmem:[%s8 + $0x18] sm:$0xff]
    %v2677 = vld [vmem:[%s9] sm:$0x1]
    %v2679 = vlaneseq
    %v2680 = vshrl.u32 %v2679, 7
    %v2681 = vsub.s32 0, %v2680
    %v2682 = vrot.slane %v2677, %v2681
    %v2685 = vsel %vm138, %v2671, 0
    %v2688 = vsel %vm138, %v2672, 0
    %2690 = vmatprep.subr.mxu0 0.0
    %2691 = vmatpush1.msra.mxu0 0.0
    %2692 = vmatprep.subr.mxu0 0.0
    %2693 = vmatpush1.msra.mxu0 0.0
    %2694 = vmatprep.subr.mxu0 0.0
    %2695 = vmatpush1.msra.mxu0 0.0
    %2696 = vmatprep.subr.mxu0 0.0
    %2697 = vmatpush1.msra.mxu0 0.0
    %2698 = vmatprep.subr.mxu0 0.0
    %2699 = vmatpush1.msra.mxu0 0.0
    %2700 = vmatprep.subr.mxu0 0.0
    %2701 = vmatpush1.msra.mxu0 0.0
    %2702 = vmatprep.subr.mxu0 0.0
    %2703 = vmatpush1.msra.mxu0 0.0
    %2704 = vmatprep.subr.mxu0 0.0
    %2705 = vmatpush1.msra.mxu0 0.0
    %2706 = vmatprep.subr.mxu0 0.0
    %2707 = vmatpush1.msra.mxu0 0.0
    %2708 = vmatprep.subr.mxu0 0.0
    %2709 = vmatpush1.msra.mxu0 0.0
    %2710 = vmatprep.subr.mxu0 0.0
    %2711 = vmatpush1.msra.mxu0 0.0
    %2712 = vmatprep.subr.mxu0 0.0
    %2713 = vmatpush1.msra.mxu0 0.0
    %2714 = vmatprep.subr.mxu0 0.0
    %2715 = vmatpush1.msra.mxu0 %v2676
    %2716 = vmatprep.subr.mxu0 0.0
    %2717 = vmatpush1.msra.mxu0 %v2675
    %2718 = vmatprep.subr.mxu0 0.0
    %2719 = vmatpush1.msra.mxu0 %v2674
    %2720 = vmatprep.subr.mxu0 0.0
    %2721 = vmatpush1.msra.mxu0 %v2673
    %2722 = vmatprep.subr.mxu0 0.0
    %2723 = vmatpush2.msra.mxu0 0.0
    %2724 = vmatprep.subr.mxu0 0.0
    %2725 = vmatpush2.msra.mxu0 0.0
    %2726 = vmatprep.subr.mxu0 0.0
    %2727 = vmatpush2.msra.mxu0 0.0
    %2728 = vmatprep.subr.mxu0 0.0
    %2729 = vmatpush2.msra.mxu0 0.0
    %2730 = vmatprep.subr.mxu0 0.0
    %2731 = vmatpush2.msra.mxu0 0.0
    %2732 = vmatprep.subr.mxu0 0.0
    %2733 = vmatpush2.msra.mxu0 0.0
    %2734 = vmatprep.subr.mxu0 0.0
    %2735 = vmatpush2.msra.mxu0 0.0
    %2736 = vmatprep.subr.mxu0 0.0
    %2737 = vmatpush2.msra.mxu0 0.0
    %2738 = vmatprep.subr.mxu0 0.0
    %2739 = vmatpush2.msra.mxu0 0.0
    %2740 = vmatprep.subr.mxu0 0.0
    %2741 = vmatpush2.msra.mxu0 0.0
    %2742 = vmatprep.subr.mxu0 0.0
    %2743 = vmatpush2.msra.mxu0 0.0
    %2744 = vmatprep.subr.mxu0 0.0
    %2745 = vmatpush2.msra.mxu0 0.0
    %2746 = vmatprep.subr.mxu0 0.0
    %2747 = vmatpush2.msra.mxu0 0.0
    %2748 = vmatprep.subr.mxu0 0.0
    %2749 = vmatpush2.msra.mxu0 0.0
    %2750 = vmatprep.subr.mxu0 0.0
    %2751 = vmatpush2.msra.mxu0 0.0
    %2752 = vmatprep.subr.mxu0 0.0
    %2753 = vmatpush2.msra.mxu0 0.0
    %2754 = vmatprep.mubr.f32.mxu0 0.0
    %2755 = vmatmul.mubr.f32.gmra.mxu0 %v2685
    %v2756 = vpop.f32.mrf.mxu0
    %v2757 = vadd.f32 %v2682, %v2756
    %v2758 = vpop.f32.mrf.mxu0
    %2759 = vmatprep.mubr.f32.mxu0 0.0
    %2760 = vmatmul.mubr.f32.gmra.mxu0 %v2688
    %v2761 = vpop.f32.mrf.mxu0
    %v2762 = vadd.f32 %v2682, %v2761
    %v2763 = vpop.f32.mrf.mxu0
    %2764 = vdwg.mxu0
    %v2765 = vmax.f32 %v2757, 0.0
    %v2766 = vmax.f32 %v2762, 0.0
    %v2767 = vld [vmem:[%s10] sm:$0xff]
    %v2768 = vld [vmem:[%s10 + $0x8] sm:$0xff]
    %v2769 = vld [vmem:[%s10 + $0x10] sm:$0xff]
    %v2770 = vld [vmem:[%s10 + $0x18] sm:$0xff]
    %v2771 = vld [vmem:[%s10 + $0x20] sm:$0xff]
    %v2772 = vld [vmem:[%s10 + $0x28] sm:$0xff]
    %v2773 = vld [vmem:[%s10 + $0x30] sm:$0xff]
    %v2774 = vld [vmem:[%s10 + $0x38] sm:$0xff]
    %v2775 = vld [vmem:[%s10 + $0x40] sm:$0xff]
    %v2776 = vld [vmem:[%s10 + $0x48] sm:$0xff]
    %v2777 = vld [vmem:[%s10 + $0x50] sm:$0xff]
    %v2778 = vld [vmem:[%s10 + $0x58] sm:$0xff]
    %v2779 = vld [vmem:[%s10 + $0x60] sm:$0xff]
    %v2780 = vld [vmem:[%s10 + $0x68] sm:$0xff]
    %v2781 = vld [vmem:[%s10 + $0x70] sm:$0xff]
    %v2782 = vld [vmem:[%s10 + $0x78] sm:$0xff]
    %v2783 = vld [vmem:[%s11] sm:$0x1]
    %v2785 = vlaneseq
    %v2786 = vshrl.u32 %v2785, 7
    %v2787 = vsub.s32 0, %v2786
    %v2788 = vrot.slane %v2783, %v2787
    %2790 = vmatprep.subr.mxu0 0.0
    %2791 = vmatpush1.msra.mxu0 %v2782
    %2792 = vmatprep.subr.mxu0 0.0
    %2793 = vmatpush1.msra.mxu0 %v2781
    %2794 = vmatprep.subr.mxu0 0.0
    %2795 = vmatpush1.msra.mxu0 %v2780
    %2796 = vmatprep.subr.mxu0 0.0
    %2797 = vmatpush1.msra.mxu0 %v2779
    %2798 = vmatprep.subr.mxu0 0.0
    %2799 = vmatpush1.msra.mxu0 %v2778
    %2800 = vmatprep.subr.mxu0 0.0
    %2801 = vmatpush1.msra.mxu0 %v2777
    %2802 = vmatprep.subr.mxu0 0.0
    %2803 = vmatpush1.msra.mxu0 %v2776
    %2804 = vmatprep.subr.mxu0 0.0
    %2805 = vmatpush1.msra.mxu0 %v2775
    %2806 = vmatprep.subr.mxu0 0.0
    %2807 = vmatpush1.msra.mxu0 %v2774
    %2808 = vmatprep.subr.mxu0 0.0
    %2809 = vmatpush1.msra.mxu0 %v2773
    %2810 = vmatprep.subr.mxu0 0.0
    %2811 = vmatpush1.msra.mxu0 %v2772
    %2812 = vmatprep.subr.mxu0 0.0
    %2813 = vmatpush1.msra.mxu0 %v2771
    %2814 = vmatprep.subr.mxu0 0.0
    %2815 = vmatpush1.msra.mxu0 %v2770
    %2816 = vmatprep.subr.mxu0 0.0
    %2817 = vmatpush1.msra.mxu0 %v2769
    %2818 = vmatprep.subr.mxu0 0.0
    %2819 = vmatpush1.msra.mxu0 %v2768
    %2820 = vmatprep.subr.mxu0 0.0
    %2821 = vmatpush1.msra.mxu0 %v2767
    %2822 = vmatprep.subr.mxu0 0.0
    %2823 = vmatpush2.msra.mxu0 0.0
    %2824 = vmatprep.subr.mxu0 0.0
    %2825 = vmatpush2.msra.mxu0 0.0
    %2826 = vmatprep.subr.mxu0 0.0
    %2827 = vmatpush2.msra.mxu0 0.0
    %2828 = vmatprep.subr.mxu0 0.0
    %2829 = vmatpush2.msra.mxu0 0.0
    %2830 = vmatprep.subr.mxu0 0.0
    %2831 = vmatpush2.msra.mxu0 0.0
    %2832 = vmatprep.subr.mxu0 0.0
    %2833 = vmatpush2.msra.mxu0 0.0
    %2834 = vmatprep.subr.mxu0 0.0
    %2835 = vmatpush2.msra.mxu0 0.0
    %2836 = vmatprep.subr.mxu0 0.0
    %2837 = vmatpush2.msra.mxu0 0.0
    %2838 = vmatprep.subr.mxu0 0.0
    %2839 = vmatpush2.msra.mxu0 0.0
    %2840 = vmatprep.subr.mxu0 0.0
    %2841 = vmatpush2.msra.mxu0 0.0
    %2842 = vmatprep.subr.mxu0 0.0
    %2843 = vmatpush2.msra.mxu0 0.0
    %2844 = vmatprep.subr.mxu0 0.0
    %2845 = vmatpush2.msra.mxu0 0.0
    %2846 = vmatprep.subr.mxu0 0.0
    %2847 = vmatpush2.msra.mxu0 0.0
    %2848 = vmatprep.subr.mxu0 0.0
    %2849 = vmatpush2.msra.mxu0 0.0
    %2850 = vmatprep.subr.mxu0 0.0
    %2851 = vmatpush2.msra.mxu0 0.0
    %2852 = vmatprep.subr.mxu0 0.0
    %2853 = vmatpush2.msra.mxu0 0.0
    %2854 = vmatprep.mubr.f32.mxu0 0.0
    %2855 = vmatmul.mubr.f32.gmra.mxu0 %v2765
    %v2856 = vpop.f32.mrf.mxu0
    %v2857 = vadd.f32 %v2788, %v2856
    %v2858 = vpop.f32.mrf.mxu0
    %2859 = vmatprep.mubr.f32.mxu0 0.0
    %2860 = vmatmul.mubr.f32.gmra.mxu0 %v2766
    %v2861 = vpop.f32.mrf.mxu0
    %v2862 = vadd.f32 %v2788, %v2861
    %v2863 = vpop.f32.mrf.mxu0
    %2864 = vdwg.mxu0
    %v2865 = vadd.f32 %v2671, %v2857
    %v2866 = vadd.f32 %v2672, %v2862
    %v2867 = vld [vmem:[%s12] sm:$0x1]
    %v2868 = vld [vmem:[%s13] sm:$0x1]
    %v2869 = vsel %vm138, %v2865, 0.0
    %2870 = vadd.xlane.f32.xlu0 %v2869
    %v2871 = vpop.xlane.xlu0 %2870
    %v2872 = vsel %vm138, %v2866, 0.0
    %2873 = vadd.xlane.f32.xlu0 %v2872
    %v2874 = vpop.xlane.xlu0 %2873
    %v2875 = vmul.f32 %v2871, %v2636
    %v2876 = vmul.f32 %v2874, %v2636
    %v2877 = vsub.f32 %v2865, %v2875
    %v2878 = vsub.f32 %v2866, %v2876
    %v2879 = vmul.f32 %v2877, %v2877
    %v2880 = vmul.f32 %v2878, %v2878
    %v2881 = vsel %vm138, %v2879, 0.0
    %2882 = vadd.xlane.f32.xlu0 %v2881
    %v2883 = vpop.xlane.xlu0 %2882
    %v2884 = vsel %vm138, %v2880, 0.0
    %2885 = vadd.xlane.f32.xlu0 %v2884
    %v2886 = vpop.xlane.xlu0 %2885
    %v2887 = vmul.f32 %v2883, %v2636
    %v2888 = vmul.f32 %v2886, %v2636
    %v2889 = vadd.f32 %v2887, 1e-05
    %v2890 = vadd.f32 %v2888, 1e-05
    %v2891 = vrsqrt.pop %v2889
    %v2892 = vrsqrt.pop %v2890
    %v2893 = vmul.f32 %v2877, %v2891
    %v2894 = vmul.f32 %v2878, %v2892
    %v2896 = vlaneseq
    %v2897 = vshrl.u32 %v2896, 7
    %v2898 = vsub.s32 0, %v2897
    %v2899 = vrot.slane %v2867, %v2898
    %v2901 = vmul.f32 %v2893, %v2899
    %v2902 = vmul.f32 %v2894, %v2899
    %v2904 = vlaneseq
    %v2905 = vshrl.u32 %v2904, 7
    %v2906 = vsub.s32 0, %v2905
    %v2907 = vrot.slane %v2868, %v2906
    %v2909 = vadd.f32 %v2901, %v2907
    %v2910 = vadd.f32 %v2902, %v2907
    %2911 = vst.msk [vmem:[#allocation2] sm:$0xff] %vm138, %v2909
    %2912 = vst.msk [vmem:[#allocation2 + $0x8] sm:$0xff] %vm138, %v2910
    // Predicated region
    $region58: #{transformer_decoder_layer.1} parent=1 // pred_check
      _
    $region59: #{transformer_decoder_layer.1} parent=1 // pred_check_branch
      %2914 = sbr.rel (0) target = $region61
    $region60: #{transformer_decoder_layer.1} parent=1 // pred_region
      %s2916 = ssub.s32 256, 256
      %2917 = vsyncadd [#allocation3], %s2916
      %s2918 = sshll.u32 [#allocation2], 4
      %s2919 = int_to_ptr.vmem [resolvable:$true] %s2918
      %2924 = dma.vmem_to_hbm [thread:$0]  %s2919, 256, %s14, [#allocation3], 128, 128, 8
    $region61: #{transformer_decoder_layer.1} parent=1 // pred_fallthru
      _
    // Predicated region
    $region62: #{transformer_decoder_layer.1} parent=1 // pred_check
      _
    $region63: #{transformer_decoder_layer.1} parent=1 // pred_check_branch
      %2926 = sbr.rel (0) target = $region65
    $region64: #{transformer_decoder_layer.1} parent=1 // pred_region
      %2927 = dma.done [#allocation3], 256
    $region65: #{transformer_decoder_layer.1} parent=1 // pred_fallthru
      _
    %2928 = vsyncpa [#allocation3], 1

</llo_original>
